<compile_context>
chip_gen: v6e
topology: v6e:2x2x1
jax: 0.10.0
libtpu: 0.0.40
codegen_flags: <defaults>
</compile_context>

<pallas_src>
import functools

import jax
import jax.numpy as jnp
from jax.experimental import pallas as pl
from jax.experimental.pallas import tpu as pltpu


def _round_up(x, m):
    return (x + m - 1) // m * m


def _padded_bytes(shape, itemsize):
    """Rough VMEM footprint of one buffer with (sublane, 128) minor-dim padding."""
    s = list(shape)
    if len(s) == 1:
        s = [1] + s
    sub = 8 if itemsize >= 4 else 16
    s[-1] = _round_up(s[-1], 128)
    s[-2] = _round_up(s[-2], sub)
    n = 1
    for d in s:
        n *= d
    return n * itemsize


def _vmem_estimate(b_blk, N, D, F, heads, dim_head, Do_pad):
    """Per-grid-step resident VMEM estimate (constants + 2x layer bufs + IO + scratch)."""
    M = b_blk * N
    HB = heads * b_blk
    G = 3 * heads
    consts = (2 * _padded_bytes((M, dim_head), 4)              # cos, sin
              + _padded_bytes((dim_head, dim_head), 2)         # rotate-half R
              + _padded_bytes((N, N), 4)                       # causal bias
              + _padded_bytes((D, D), 2) + _padded_bytes((1, D), 4)       # project_in
              + 2 * _padded_bytes((1, D), 4)                   # final LN
              + _padded_bytes((D, Do_pad), 2) + _padded_bytes((1, Do_pad), 4))
    per_layer = (_padded_bytes((8, D), 4) + _padded_bytes((1, F), 4)
                 + _padded_bytes((G, D, dim_head), 2)
                 + _padded_bytes((heads, dim_head, D), 2)
                 + _padded_bytes((D, F), 2) + _padded_bytes((F, D), 2))
    io = _padded_bytes((b_blk, N, D), 4) + _padded_bytes((b_blk, N, Do_pad), 4)
    scratch = _padded_bytes((M, D), 4)
    interm = 4 * (3 * G * M * dim_head + 2 * HB * N * N + HB * N * dim_head
                  + heads * M * D + M * F + 6 * M * D)
    return consts + 2 * per_layer + 2 * io + scratch + interm


def make_encoder_kernel(depth, heads, dim_head, b_blk, seq_len, d_model, d_out_pad):
    M = b_blk * seq_len            # rows per grid step (matmul M dimension)
    HB = heads * b_blk             # attention batch groups
    G = 3 * heads                  # fused q/k/v groups
    bf16 = jnp.bfloat16
    f32 = jnp.float32

    def layer_norm(h, g, b):       # torch.nn.LayerNorm, eps=1e-5 (f32)
        mu = jnp.mean(h, axis=-1, keepdims=True)
        var = jnp.mean(jnp.square(h - mu), axis=-1, keepdims=True)
        return (h - mu) * jax.lax.rsqrt(var + 1e-5) * g + b

    def kernel(x_ref, cos_ref, sin_ref, rot_ref, bias_ref,
               w_in_ref, b_in_ref, lnf_g_ref, lnf_b_ref, w_out_ref, b_out_ref,
               vecs_ref, b1_ref, wqkv_ref, wo_ref, w1_ref, w2_ref,
               o_ref, x_scr):
        l = pl.program_id(1)

        # ---- project_in (once per batch block, first layer step) ----
        @pl.when(l == 0)
        def _():
            x0 = x_ref[...].reshape(M, d_model)
            x_scr[...] = (jnp.dot(x0.astype(bf16), w_in_ref[...],
                                  preferred_element_type=f32) + b_in_ref[...])

        x = x_scr[...]                                  # (M, D) f32 residual stream

        # packed per-layer vectors: rows [ln1_g, ln1_b, bo, ln2_g, ln2_b, b2, 0, 0]
        vecs = vecs_ref[0]                              # (8, D) f32
        ln1_g, ln1_b = vecs[0:1], vecs[1:2]
        bo = vecs[2:3]
        ln2_g, ln2_b = vecs[3:4], vecs[4:5]
        b2 = vecs[5:6]

        # ---- self-attention block (pre-norm, rotary, causal) ----
        hn = layer_norm(x, ln1_g, ln1_b)
        hb = jnp.broadcast_to(hn.astype(bf16), (G, M, d_model))
        qkv = jnp.einsum('gmd,gde->gme', hb, wqkv_ref[0],
                         preferred_element_type=f32)    # (3h, M, dh), one MXU stream

        # fused RoPE for q and k (major-axis split, no concat / lane moves)
        qk = qkv[:2 * heads]                            # (2h, M, dh)
        qk_rot = jnp.dot(qk.reshape(2 * heads * M, dim_head).astype(bf16), rot_ref[...],
                         preferred_element_type=f32).reshape(2 * heads, M, dim_head)
        qk = qk * cos_ref[...] + qk_rot * sin_ref[...]  # scale folded into Wq
        q = qk[:heads]
        k = qk[heads:]
        v = qkv[2 * heads:]                             # (h, M, dh)

        q4 = q.reshape(HB, seq_len, dim_head)
        k4 = k.reshape(HB, seq_len, dim_head)
        v4 = v.reshape(HB, seq_len, dim_head)

        s = jnp.einsum('xnd,xmd->xnm', q4.astype(bf16), k4.astype(bf16),
                       preferred_element_type=f32)      # (HB, N, N)
        s = s + bias_ref[...]                           # precomputed causal bias
        s = s - jnp.max(s, axis=-1, keepdims=True)
        p = jnp.exp(s)
        p = p * pl.reciprocal(jnp.sum(p, axis=-1, keepdims=True), approx=True)

        o4 = jnp.einsum('xnm,xmd->xnd', p.astype(bf16), v4.astype(bf16),
                        preferred_element_type=f32)     # (HB, N, dh)
        o3 = o4.reshape(heads, M, dim_head)
        proj = jnp.einsum('hme,hef->hmf', o3.astype(bf16), wo_ref[0],
                          preferred_element_type=f32)   # (h, M, D)
        x = x + jnp.sum(proj, axis=0) + bo

        # ---- feedforward block (pre-norm, tanh-approx GELU) ----
        hn = layer_norm(x, ln2_g, ln2_b)
        h1 = jnp.dot(hn.astype(bf16), w1_ref[0], preferred_element_type=f32) + b1_ref[0]
        h1 = jax.nn.gelu(h1, approximate=True)
        h2 = jnp.dot(h1.astype(bf16), w2_ref[0], preferred_element_type=f32) + b2
        x = x + h2

        x_scr[...] = x

        # ---- final norm + project_out (last layer step, lane-dense output) ----
        @pl.when(l == depth - 1)
        def _():
            xf = layer_norm(x, lnf_g_ref[...], lnf_b_ref[...])
            out = (jnp.dot(xf.astype(bf16), w_out_ref[...],
                           preferred_element_type=f32) + b_out_ref[...])
            o_ref[...] = out.reshape(b_blk, seq_len, d_out_pad)

    return kernel


def init_params(key, dim_in, dim_out, depth, heads, dim_head):
    D = dim_in * 2
    I = heads * dim_head
    F = 4 * D
    ks = jax.random.split(key, 8)
    rnd = lambda k, shp: 0.02 * jax.random.normal(k, shp, dtype=jnp.float32)
    f32 = jnp.float32
    return dict(
        w_in=rnd(ks[0], (D, D)), b_in=jnp.zeros((1, D), f32),
        ln1_g=jnp.ones((depth, D), f32), ln1_b=jnp.zeros((depth, D), f32),
        wq=rnd(ks[1], (depth, D, I)), wk=rnd(ks[2], (depth, D, I)),
        wv=rnd(ks[3], (depth, D, I)),
        wo=rnd(ks[4], (depth, I, D)), bo=jnp.zeros((depth, D), f32),
        ln2_g=jnp.ones((depth, D), f32), ln2_b=jnp.zeros((depth, D), f32),
        w1=rnd(ks[5], (depth, D, F)), b1=jnp.zeros((depth, F), f32),
        w2=rnd(ks[6], (depth, F, D)), b2=jnp.zeros((depth, D), f32),
        lnf_g=jnp.ones((1, D), f32), lnf_b=jnp.zeros((1, D), f32),
        w_out=rnd(ks[7], (D, dim_out)), b_out=jnp.zeros((1, dim_out), f32),
    )


@functools.partial(jax.jit, static_argnames=("depth", "heads", "dim_head", "rotary_dim"))
def transformer_encoder_layer(features, missingness_mask, params, *,
                              depth, heads, dim_head, rotary_dim):
    # JAX glue: concat, rotary tables, fused/per-head bf16 weight layout. Hot path is the kernel.
    x = jnp.concatenate([features, missingness_mask], axis=-1)        # (B, N, D)
    B, N, D = x.shape
    Do = params["w_out"].shape[-1]
    F = 4 * D
    half_rd = rotary_dim // 2
    bf16 = jnp.bfloat16
    Do_pad = _round_up(Do, 128)                                       # lane-dense output

    # -- batch blocking: fold batch rows into the matmul M dimension ----------
    rows_target = 256                     # fill the 256-wide MXU M dim (v6e/v7x)
    b_blk = max(1, min(B, max(1, rows_target // N)))
    if B >= 2:                            # keep nb >= 2 so v7x's 2 TCs both get work
        b_blk = min(b_blk, max(1, B // 2))
    budget = 48 * 1024 * 1024             # v7x-safe resident budget (64 MiB physical/TC)
    while b_blk > 1 and _vmem_estimate(b_blk, N, D, F, heads, dim_head, Do_pad) > budget:
        b_blk = max(1, b_blk // 2)
    est = _vmem_estimate(b_blk, N, D, F, heads, dim_head, Do_pad)
    vmem_limit = int(min(max(32 * 1024 * 1024, 2 * est), 96 * 1024 * 1024))

    nb = pl.cdiv(B, b_blk)
    B_pad = nb * b_blk
    if B_pad != B:
        x = jnp.pad(x, ((0, B_pad - B), (0, 0), (0, 0)))
    M = b_blk * N

    # -- rotary tables padded to dim_head, tiled over the batch block ---------
    inv_freq = 1.0 / (10000.0 ** (jnp.arange(0, rotary_dim, 2, dtype=jnp.float32) / rotary_dim))
    t = jnp.arange(N, dtype=jnp.float32)
    freqs = t[:, None] * inv_freq[None, :]
    emb = jnp.concatenate([freqs, freqs], axis=-1)                    # (N, rotary_dim)
    cos = jnp.concatenate([jnp.cos(emb),
                           jnp.ones((N, dim_head - rotary_dim), jnp.float32)], axis=-1)
    sin = jnp.concatenate([jnp.sin(emb),
                           jnp.zeros((N, dim_head - rotary_dim), jnp.float32)], axis=-1)
    cos_t = jnp.tile(cos, (b_blk, 1))                                 # (M, dim_head)
    sin_t = jnp.tile(sin, (b_blk, 1))
    # rotate_half as a constant (dim_head, dim_head) matmul: rh(t) = t @ R
    i = jnp.arange(dim_head)
    ri, ci = i[:, None], i[None, :]
    rot = (jnp.where((ci < half_rd) & (ri == ci + half_rd), -1.0, 0.0)
           + jnp.where((ci >= half_rd) & (ci < rotary_dim) & (ri == ci - half_rd), 1.0, 0.0))
    rot = rot.astype(bf16)

    # -- additive causal bias, precomputed once -------------------------------
    rr = jnp.arange(N)[:, None]
    cc = jnp.arange(N)[None, :]
    causal_bias = jnp.where(cc <= rr, 0.0, -1e30).astype(jnp.float32)  # (N, N)

    # -- weights: fused q/k/v per-head layout, bf16 for MXU, scale folded into Wq
    scale = dim_head ** -0.5
    to_heads = lambda w: w.reshape(depth, D, heads, dim_head).transpose(0, 2, 1, 3)
    wqkv = jnp.concatenate([to_heads(params["wq"] * scale),
                            to_heads(params["wk"]),
                            to_heads(params["wv"])], axis=1).astype(bf16)  # (depth, 3h, D, dh)
    wo = params["wo"].reshape(depth, heads, dim_head, D).astype(bf16)
    w1 = params["w1"].astype(bf16)
    w2 = params["w2"].astype(bf16)
    w_in = params["w_in"].astype(bf16)
    w_out = jnp.zeros((D, Do_pad), bf16).at[:, :Do].set(params["w_out"].astype(bf16))
    b_out = jnp.zeros((1, Do_pad), jnp.float32).at[:, :Do].set(params["b_out"])
    # pack the small per-layer vectors into one (depth, 8, D) array (fewer DMAs)
    vecs = jnp.stack([params["ln1_g"], params["ln1_b"], params["bo"],
                      params["ln2_g"], params["ln2_b"], params["b2"]], axis=1)  # (depth, 6, D)
    vecs = jnp.pad(vecs, ((0, 0), (0, 2), (0, 0)))                              # (depth, 8, D)
    b1 = params["b1"].reshape(depth, 1, F)

    # constant (layer-independent) inputs: whole array resident in VMEM
    const_vmem = pl.BlockSpec(memory_space=pltpu.MemorySpace.VMEM)
    in_specs = [
        pl.BlockSpec((b_blk, N, D), lambda b, l: (b, 0, 0)),          # x (batch-blocked)
        const_vmem, const_vmem, const_vmem, const_vmem,               # cos, sin, R, causal bias
        const_vmem, const_vmem,                                       # project_in W, b
        const_vmem, const_vmem,                                       # final LN g, b
        const_vmem, const_vmem,                                       # project_out W, b (padded)
        pl.BlockSpec((1, 8, D), lambda b, l: (l, 0, 0)),              # packed per-layer vectors
        pl.BlockSpec((1, 1, F), lambda b, l: (l, 0, 0)),              # b1
        pl.BlockSpec((1, 3 * heads, D, dim_head), lambda b, l: (l, 0, 0, 0)),  # Wqkv fused
        pl.BlockSpec((1, heads, dim_head, D), lambda b, l: (l, 0, 0, 0)),      # Wo
        pl.BlockSpec((1, D, F), lambda b, l: (l, 0, 0)),              # W1
        pl.BlockSpec((1, F, D), lambda b, l: (l, 0, 0)),              # W2
    ]

    kernel = make_encoder_kernel(depth, heads, dim_head, b_blk, N, D, Do_pad)
    out = pl.pallas_call(
        kernel,
        out_shape=jax.ShapeDtypeStruct((B_pad, N, Do_pad), jnp.float32),
        grid=(nb, depth),                                             # depth streamed, "arbitrary"
        in_specs=in_specs,
        out_specs=pl.BlockSpec((b_blk, N, Do_pad), lambda b, l: (b, 0, 0)),
        scratch_shapes=[pltpu.VMEM((M, D), jnp.float32)],             # residual stream carry
        compiler_params=pltpu.CompilerParams(
            dimension_semantics=("parallel", "arbitrary"),
            vmem_limit_bytes=vmem_limit),
    )(x, cos_t, sin_t, rot, causal_bias,
      w_in, params["b_in"], params["lnf_g"], params["lnf_b"], w_out, b_out,
      vecs, b1, wqkv, wo, w1, w2)
    return out[:B, :, :Do]


if __name__ == "__main__":
    # module hyperparameters (small, consistent with the PyTorch module)
    dynamic_dim_in = 16      # -> model dim D = 32 (features + missingness mask)
    dynamic_dim_out = 16
    max_seq_len = 8
    depth = 2
    heads = 2
    dim_head = 64            # x-transformers Attention default
    rotary_dim = max(dim_head // 2, 32)   # = 32

    B, N = 2, max_seq_len
    key = jax.random.PRNGKey(0)
    kf, km, kp = jax.random.split(key, 3)
    features = jax.random.normal(kf, (B, N, dynamic_dim_in), dtype=jnp.float32)
    missingness_mask = (jax.random.uniform(km, (B, N, dynamic_dim_in)) > 0.5).astype(jnp.float32)
    params = init_params(kp, dynamic_dim_in, dynamic_dim_out, depth, heads, dim_head)

    out = transformer_encoder_layer(features, missingness_mask, params,
                                    depth=depth, heads=heads,
                                    dim_head=dim_head, rotary_dim=rotary_dim)
    jax.block_until_ready(out)
    assert out.shape == (B, N, dynamic_dim_out) and out.dtype == jnp.float32
    assert bool(jnp.all(jnp.isfinite(out)))
    print("KERNEL_OK")
</pallas_src>

<mosaic_0001>
module attributes {stable_mosaic.version = 11 : i64} {
  func.func @kernel(%arg0: i32, %arg1: i32, %arg2: memref<1x8x32xf32, #tpu.memory_space<vmem>>, %arg3: memref<8x64xf32, #tpu.memory_space<vmem>>, %arg4: memref<8x64xf32, #tpu.memory_space<vmem>>, %arg5: memref<64x64xbf16, #tpu.memory_space<vmem>>, %arg6: memref<8x8xf32, #tpu.memory_space<vmem>>, %arg7: memref<32x32xbf16, #tpu.memory_space<vmem>>, %arg8: memref<1x32xf32, #tpu.memory_space<vmem>>, %arg9: memref<1x32xf32, #tpu.memory_space<vmem>>, %arg10: memref<1x32xf32, #tpu.memory_space<vmem>>, %arg11: memref<32x128xbf16, #tpu.memory_space<vmem>>, %arg12: memref<1x128xf32, #tpu.memory_space<vmem>>, %arg13: memref<1x8x32xf32, #tpu.memory_space<vmem>>, %arg14: memref<1x1x128xf32, #tpu.memory_space<vmem>>, %arg15: memref<1x6x32x64xbf16, #tpu.memory_space<vmem>>, %arg16: memref<1x2x64x32xbf16, #tpu.memory_space<vmem>>, %arg17: memref<1x32x128xbf16, #tpu.memory_space<vmem>>, %arg18: memref<1x128x32xbf16, #tpu.memory_space<vmem>>, %arg19: memref<1x8x128xf32, #tpu.memory_space<vmem>>, %arg20: memref<8x32xf32, #tpu.memory_space<vmem>>) attributes {dimension_semantics = [#tpu.dimension_semantics<parallel>, #tpu.dimension_semantics<arbitrary>], iteration_bounds = array<i64: 2, 2>, scalar_prefetch = 0 : i64, scratch_operands = 1 : i64, tpu.core_type = #tpu.core_type<tc>, window_params = [{transform_indices = @transform_0, window_bounds = array<i64: 1, 8, 32>}, {pipeline_mode = #tpu.pipeline_mode<synchronous>, transform_indices = @transform_1, window_bounds = array<i64: 8, 64>}, {pipeline_mode = #tpu.pipeline_mode<synchronous>, transform_indices = @transform_2, window_bounds = array<i64: 8, 64>}, {pipeline_mode = #tpu.pipeline_mode<synchronous>, transform_indices = @transform_3, window_bounds = array<i64: 64, 64>}, {pipeline_mode = #tpu.pipeline_mode<synchronous>, transform_indices = @transform_4, window_bounds = array<i64: 8, 8>}, {pipeline_mode = #tpu.pipeline_mode<synchronous>, transform_indices = @transform_5, window_bounds = array<i64: 32, 32>}, {pipeline_mode = #tpu.pipeline_mode<synchronous>, transform_indices = @transform_6, window_bounds = array<i64: 1, 32>}, {pipeline_mode = #tpu.pipeline_mode<synchronous>, transform_indices = @transform_7, window_bounds = array<i64: 1, 32>}, {pipeline_mode = #tpu.pipeline_mode<synchronous>, transform_indices = @transform_8, window_bounds = array<i64: 1, 32>}, {pipeline_mode = #tpu.pipeline_mode<synchronous>, transform_indices = @transform_9, window_bounds = array<i64: 32, 128>}, {pipeline_mode = #tpu.pipeline_mode<synchronous>, transform_indices = @transform_10, window_bounds = array<i64: 1, 128>}, {transform_indices = @transform_11, window_bounds = array<i64: 1, 8, 32>}, {transform_indices = @transform_12, window_bounds = array<i64: 1, 1, 128>}, {transform_indices = @transform_13, window_bounds = array<i64: 1, 6, 32, 64>}, {transform_indices = @transform_14, window_bounds = array<i64: 1, 2, 64, 32>}, {transform_indices = @transform_15, window_bounds = array<i64: 1, 32, 128>}, {transform_indices = @transform_16, window_bounds = array<i64: 1, 128, 32>}, {transform_indices = @transform_17, window_bounds = array<i64: 1, 8, 128>}]} {
    %c0_i32 = arith.constant 0 : i32
    %0 = arith.cmpi eq, %arg1, %c0_i32 : i32
    %1 = arith.extui %0 : i1 to i32
    %c0_i32_0 = arith.constant 0 : i32
    %2 = arith.cmpi ne, %1, %c0_i32_0 : i32
    scf.if %2 {
      %c0_56 = arith.constant 0 : index
      %c0_57 = arith.constant 0 : index
      %c0_58 = arith.constant 0 : index
      %140 = vector.load %arg2[%c0_56, %c0_57, %c0_58] : memref<1x8x32xf32, #tpu.memory_space<vmem>>, vector<1x8x32xf32>
      %141 = vector.shape_cast %140 : vector<1x8x32xf32> to vector<8x32xf32>
      %142 = arith.truncf %141 : vector<8x32xf32> to vector<8x32xbf16>
      %c0_59 = arith.constant 0 : index
      %c0_60 = arith.constant 0 : index
      %143 = vector.load %arg7[%c0_59, %c0_60] : memref<32x32xbf16, #tpu.memory_space<vmem>>, vector<32x32xbf16>
      %cst_61 = arith.constant dense<0.000000e+00> : vector<8x32xf32>
      %144 = tpu.matmul %142, %143, %cst_61 {dimension_numbers = #tpu.dot_dimension_numbers<[1], [0], [0], [1], [0, 0, 1, 1], [], []>} : vector<8x32xbf16>, vector<32x32xbf16>, vector<8x32xf32> -> vector<8x32xf32>
      %c0_62 = arith.constant 0 : index
      %c0_63 = arith.constant 0 : index
      %145 = vector.load %arg8[%c0_62, %c0_63] : memref<1x32xf32, #tpu.memory_space<vmem>>, vector<1x32xf32>
      %146 = vector.broadcast %145 : vector<1x32xf32> to vector<8x32xf32>
      %147 = arith.addf %144, %146 : vector<8x32xf32>
      %c0_64 = arith.constant 0 : index
      %c0_65 = arith.constant 0 : index
      %148 = vector.load %arg20[%c0_64, %c0_65] : memref<8x32xf32, #tpu.memory_space<vmem>>, vector<8x32xf32>
      tpu.vector_store %arg20[%c0_64, %c0_65], %147 {strides = array<i32>} : memref<8x32xf32, #tpu.memory_space<vmem>>, vector<8x32xf32>,
    } else {
    }
    %c0 = arith.constant 0 : index
    %c0_1 = arith.constant 0 : index
    %3 = vector.load %arg20[%c0, %c0_1] : memref<8x32xf32, #tpu.memory_space<vmem>>, vector<8x32xf32>
    %c0_2 = arith.constant 0 : index
    %c0_3 = arith.constant 0 : index
    %c0_4 = arith.constant 0 : index
    %4 = vector.load %arg13[%c0_2, %c0_3, %c0_4] : memref<1x8x32xf32, #tpu.memory_space<vmem>>, vector<1x8x32xf32>
    %5 = vector.shape_cast %4 : vector<1x8x32xf32> to vector<8x32xf32>
    %6 = vector.extract_strided_slice %5 {offsets = [0, 0], sizes = [1, 32], strides = [1, 1]} : vector<8x32xf32> to vector<1x32xf32>
    %7 = vector.extract_strided_slice %5 {offsets = [1, 0], sizes = [1, 32], strides = [1, 1]} : vector<8x32xf32> to vector<1x32xf32>
    %8 = vector.extract_strided_slice %5 {offsets = [2, 0], sizes = [1, 32], strides = [1, 1]} : vector<8x32xf32> to vector<1x32xf32>
    %9 = vector.extract_strided_slice %5 {offsets = [3, 0], sizes = [1, 32], strides = [1, 1]} : vector<8x32xf32> to vector<1x32xf32>
    %10 = vector.extract_strided_slice %5 {offsets = [4, 0], sizes = [1, 32], strides = [1, 1]} : vector<8x32xf32> to vector<1x32xf32>
    %11 = vector.extract_strided_slice %5 {offsets = [5, 0], sizes = [1, 32], strides = [1, 1]} : vector<8x32xf32> to vector<1x32xf32>
    %cst = arith.constant dense<0.000000e+00> : vector<8xf32>
    %12 = vector.multi_reduction <add>, %3, %cst [1] : vector<8x32xf32> to vector<8xf32>
    %13 = vector.shape_cast %12 : vector<8xf32> to vector<8x1xf32>
    %cst_5 = arith.constant 3.200000e+01 : f32
    %14 = vector.broadcast %cst_5 : f32 to vector<8x1xf32>
    %15 = arith.divf %13, %14 : vector<8x1xf32>
    %16 = vector.broadcast %15 : vector<8x1xf32> to vector<8x32xf32>
    %17 = arith.subf %3, %16 : vector<8x32xf32>
    %18 = arith.mulf %17, %17 : vector<8x32xf32>
    %cst_6 = arith.constant dense<0.000000e+00> : vector<8xf32>
    %19 = vector.multi_reduction <add>, %18, %cst_6 [1] : vector<8x32xf32> to vector<8xf32>
    %20 = vector.shape_cast %19 : vector<8xf32> to vector<8x1xf32>
    %cst_7 = arith.constant 3.200000e+01 : f32
    %21 = vector.broadcast %cst_7 : f32 to vector<8x1xf32>
    %22 = arith.divf %20, %21 : vector<8x1xf32>
    %23 = vector.broadcast %15 : vector<8x1xf32> to vector<8x32xf32>
    %24 = arith.subf %3, %23 : vector<8x32xf32>
    %cst_8 = arith.constant 9.99999974E-6 : f32
    %25 = vector.broadcast %cst_8 : f32 to vector<8x1xf32>
    %26 = arith.addf %22, %25 : vector<8x1xf32>
    %27 = math.rsqrt %26 : vector<8x1xf32>
    %28 = vector.broadcast %27 : vector<8x1xf32> to vector<8x32xf32>
    %29 = arith.mulf %24, %28 : vector<8x32xf32>
    %30 = vector.broadcast %6 : vector<1x32xf32> to vector<8x32xf32>
    %31 = arith.mulf %29, %30 : vector<8x32xf32>
    %32 = vector.broadcast %7 : vector<1x32xf32> to vector<8x32xf32>
    %33 = arith.addf %31, %32 : vector<8x32xf32>
    %34 = arith.truncf %33 : vector<8x32xf32> to vector<8x32xbf16>
    %35 = vector.shape_cast %34 : vector<8x32xbf16> to vector<1x8x32xbf16>
    %36 = vector.broadcast %35 : vector<1x8x32xbf16> to vector<6x8x32xbf16>
    %c0_9 = arith.constant 0 : index
    %c0_10 = arith.constant 0 : index
    %c0_11 = arith.constant 0 : index
    %c0_12 = arith.constant 0 : index
    %37 = vector.load %arg15[%c0_9, %c0_10, %c0_11, %c0_12] : memref<1x6x32x64xbf16, #tpu.memory_space<vmem>>, vector<1x6x32x64xbf16>
    %38 = vector.shape_cast %37 : vector<1x6x32x64xbf16> to vector<6x32x64xbf16>
    "tpu.trace_start"() <{level = 10 : i32, message = "gmd,gde->gme"}> : () -> ()
    %cst_13 = arith.constant dense<0.000000e+00> : vector<6x8x64xf32>
    %39 = tpu.matmul %36, %38, %cst_13 {dimension_numbers = #tpu.dot_dimension_numbers<[2], [1], [1], [2], [0, 0, 0, 1, 1, 2], [0], [0]>} : vector<6x8x32xbf16>, vector<6x32x64xbf16>, vector<6x8x64xf32> -> vector<6x8x64xf32>
    "tpu.trace_stop"() : () -> ()
    %40 = vector.extract_strided_slice %39 {offsets = [0, 0, 0], sizes = [4, 8, 64], strides = [1, 1, 1]} : vector<6x8x64xf32> to vector<4x8x64xf32>
    %41 = vector.shape_cast %40 : vector<4x8x64xf32> to vector<32x64xf32>
    %42 = arith.truncf %41 : vector<32x64xf32> to vector<32x64xbf16>
    %c0_14 = arith.constant 0 : index
    %c0_15 = arith.constant 0 : index
    %43 = vector.load %arg5[%c0_14, %c0_15] : memref<64x64xbf16, #tpu.memory_space<vmem>>, vector<64x64xbf16>
    %cst_16 = arith.constant dense<0.000000e+00> : vector<32x64xf32>
    %44 = tpu.matmul %42, %43, %cst_16 {dimension_numbers = #tpu.dot_dimension_numbers<[1], [0], [0], [1], [0, 0, 1, 1], [], []>} : vector<32x64xbf16>, vector<64x64xbf16>, vector<32x64xf32> -> vector<32x64xf32>
    %45 = vector.shape_cast %44 : vector<32x64xf32> to vector<4x8x64xf32>
    %c0_17 = arith.constant 0 : index
    %c0_18 = arith.constant 0 : index
    %46 = vector.load %arg3[%c0_17, %c0_18] : memref<8x64xf32, #tpu.memory_space<vmem>>, vector<8x64xf32>
    %47 = vector.shape_cast %46 : vector<8x64xf32> to vector<1x8x64xf32>
    %48 = vector.broadcast %47 : vector<1x8x64xf32> to vector<4x8x64xf32>
    %49 = arith.mulf %40, %48 : vector<4x8x64xf32>
    %c0_19 = arith.constant 0 : index
    %c0_20 = arith.constant 0 : index
    %50 = vector.load %arg4[%c0_19, %c0_20] : memref<8x64xf32, #tpu.memory_space<vmem>>, vector<8x64xf32>
    %51 = vector.shape_cast %50 : vector<8x64xf32> to vector<1x8x64xf32>
    %52 = vector.broadcast %51 : vector<1x8x64xf32> to vector<4x8x64xf32>
    %53 = arith.mulf %45, %52 : vector<4x8x64xf32>
    %54 = arith.addf %49, %53 : vector<4x8x64xf32>
    %55 = vector.extract_strided_slice %54 {offsets = [0, 0, 0], sizes = [2, 8, 64], strides = [1, 1, 1]} : vector<4x8x64xf32> to vector<2x8x64xf32>
    %56 = vector.extract_strided_slice %54 {offsets = [2, 0, 0], sizes = [2, 8, 64], strides = [1, 1, 1]} : vector<4x8x64xf32> to vector<2x8x64xf32>
    %57 = vector.extract_strided_slice %39 {offsets = [4, 0, 0], sizes = [2, 8, 64], strides = [1, 1, 1]} : vector<6x8x64xf32> to vector<2x8x64xf32>
    %58 = arith.truncf %55 : vector<2x8x64xf32> to vector<2x8x64xbf16>
    %59 = arith.truncf %56 : vector<2x8x64xf32> to vector<2x8x64xbf16>
    "tpu.trace_start"() <{level = 10 : i32, message = "xnd,xmd->xnm"}> : () -> ()
    %cst_21 = arith.constant dense<0.000000e+00> : vector<2x8x8xf32>
    %60 = tpu.matmul %58, %59, %cst_21 {dimension_numbers = #tpu.dot_dimension_numbers<[2], [2], [1], [1], [0, 0, 0, 1, 1, 1], [0], [0]>} : vector<2x8x64xbf16>, vector<2x8x64xbf16>, vector<2x8x8xf32> -> vector<2x8x8xf32>
    "tpu.trace_stop"() : () -> ()
    %c0_22 = arith.constant 0 : index
    %c0_23 = arith.constant 0 : index
    %61 = vector.load %arg6[%c0_22, %c0_23] : memref<8x8xf32, #tpu.memory_space<vmem>>, vector<8x8xf32>
    %62 = vector.shape_cast %61 : vector<8x8xf32> to vector<1x8x8xf32>
    %63 = vector.broadcast %62 : vector<1x8x8xf32> to vector<2x8x8xf32>
    %64 = arith.addf %60, %63 : vector<2x8x8xf32>
    %cst_24 = arith.constant dense<0xFF800000> : vector<2x8xf32>
    %65 = vector.multi_reduction <maximumf>, %64, %cst_24 [2] : vector<2x8x8xf32> to vector<2x8xf32>
    %66 = vector.shape_cast %65 : vector<2x8xf32> to vector<2x8x1xf32>
    %67 = vector.broadcast %66 : vector<2x8x1xf32> to vector<2x8x8xf32>
    %68 = arith.subf %64, %67 : vector<2x8x8xf32>
    %69 = math.exp %68 : vector<2x8x8xf32>
    %cst_25 = arith.constant dense<0.000000e+00> : vector<2x8xf32>
    %70 = vector.multi_reduction <add>, %69, %cst_25 [2] : vector<2x8x8xf32> to vector<2x8xf32>
    %71 = vector.shape_cast %70 : vector<2x8xf32> to vector<2x8x1xf32>
    %72 = tpu.reciprocal %71 {approx = true} : vector<2x8x1xf32> -> vector<2x8x1xf32>
    %73 = vector.broadcast %72 : vector<2x8x1xf32> to vector<2x8x8xf32>
    %74 = arith.mulf %69, %73 : vector<2x8x8xf32>
    %75 = arith.truncf %74 : vector<2x8x8xf32> to vector<2x8x8xbf16>
    %76 = arith.truncf %57 : vector<2x8x64xf32> to vector<2x8x64xbf16>
    "tpu.trace_start"() <{level = 10 : i32, message = "xnm,xmd->xnd"}> : () -> ()
    %cst_26 = arith.constant dense<0.000000e+00> : vector<2x8x64xf32>
    %77 = tpu.matmul %75, %76, %cst_26 {dimension_numbers = #tpu.dot_dimension_numbers<[2], [1], [1], [2], [0, 0, 0, 1, 1, 2], [0], [0]>} : vector<2x8x8xbf16>, vector<2x8x64xbf16>, vector<2x8x64xf32> -> vector<2x8x64xf32>
    "tpu.trace_stop"() : () -> ()
    %78 = arith.truncf %77 : vector<2x8x64xf32> to vector<2x8x64xbf16>
    %c0_27 = arith.constant 0 : index
    %c0_28 = arith.constant 0 : index
    %c0_29 = arith.constant 0 : index
    %c0_30 = arith.constant 0 : index
    %79 = vector.load %arg16[%c0_27, %c0_28, %c0_29, %c0_30] : memref<1x2x64x32xbf16, #tpu.memory_space<vmem>>, vector<1x2x64x32xbf16>
    %80 = vector.shape_cast %79 : vector<1x2x64x32xbf16> to vector<2x64x32xbf16>
    "tpu.trace_start"() <{level = 10 : i32, message = "hme,hef->hmf"}> : () -> ()
    %cst_31 = arith.constant dense<0.000000e+00> : vector<2x8x32xf32>
    %81 = tpu.matmul %78, %80, %cst_31 {dimension_numbers = #tpu.dot_dimension_numbers<[2], [1], [1], [2], [0, 0, 0, 1, 1, 2], [0], [0]>} : vector<2x8x64xbf16>, vector<2x64x32xbf16>, vector<2x8x32xf32> -> vector<2x8x32xf32>
    "tpu.trace_stop"() : () -> ()
    %cst_32 = arith.constant dense<0.000000e+00> : vector<8x32xf32>
    %82 = vector.multi_reduction <add>, %81, %cst_32 [0] : vector<2x8x32xf32> to vector<8x32xf32>
    %83 = arith.addf %3, %82 : vector<8x32xf32>
    %84 = vector.broadcast %8 : vector<1x32xf32> to vector<8x32xf32>
    %85 = arith.addf %83, %84 : vector<8x32xf32>
    %cst_33 = arith.constant dense<0.000000e+00> : vector<8xf32>
    %86 = vector.multi_reduction <add>, %85, %cst_33 [1] : vector<8x32xf32> to vector<8xf32>
    %87 = vector.shape_cast %86 : vector<8xf32> to vector<8x1xf32>
    %cst_34 = arith.constant 3.200000e+01 : f32
    %88 = vector.broadcast %cst_34 : f32 to vector<8x1xf32>
    %89 = arith.divf %87, %88 : vector<8x1xf32>
    %90 = vector.broadcast %89 : vector<8x1xf32> to vector<8x32xf32>
    %91 = arith.subf %85, %90 : vector<8x32xf32>
    %92 = arith.mulf %91, %91 : vector<8x32xf32>
    %cst_35 = arith.constant dense<0.000000e+00> : vector<8xf32>
    %93 = vector.multi_reduction <add>, %92, %cst_35 [1] : vector<8x32xf32> to vector<8xf32>
    %94 = vector.shape_cast %93 : vector<8xf32> to vector<8x1xf32>
    %cst_36 = arith.constant 3.200000e+01 : f32
    %95 = vector.broadcast %cst_36 : f32 to vector<8x1xf32>
    %96 = arith.divf %94, %95 : vector<8x1xf32>
    %97 = vector.broadcast %89 : vector<8x1xf32> to vector<8x32xf32>
    %98 = arith.subf %85, %97 : vector<8x32xf32>
    %cst_37 = arith.constant 9.99999974E-6 : f32
    %99 = vector.broadcast %cst_37 : f32 to vector<8x1xf32>
    %100 = arith.addf %96, %99 : vector<8x1xf32>
    %101 = math.rsqrt %100 : vector<8x1xf32>
    %102 = vector.broadcast %101 : vector<8x1xf32> to vector<8x32xf32>
    %103 = arith.mulf %98, %102 : vector<8x32xf32>
    %104 = vector.broadcast %9 : vector<1x32xf32> to vector<8x32xf32>
    %105 = arith.mulf %103, %104 : vector<8x32xf32>
    %106 = vector.broadcast %10 : vector<1x32xf32> to vector<8x32xf32>
    %107 = arith.addf %105, %106 : vector<8x32xf32>
    %108 = arith.truncf %107 : vector<8x32xf32> to vector<8x32xbf16>
    %c0_38 = arith.constant 0 : index
    %c0_39 = arith.constant 0 : index
    %c0_40 = arith.constant 0 : index
    %109 = vector.load %arg17[%c0_38, %c0_39, %c0_40] : memref<1x32x128xbf16, #tpu.memory_space<vmem>>, vector<1x32x128xbf16>
    %110 = vector.shape_cast %109 : vector<1x32x128xbf16> to vector<32x128xbf16>
    %cst_41 = arith.constant dense<0.000000e+00> : vector<8x128xf32>
    %111 = tpu.matmul %108, %110, %cst_41 {dimension_numbers = #tpu.dot_dimension_numbers<[1], [0], [0], [1], [0, 0, 1, 1], [], []>} : vector<8x32xbf16>, vector<32x128xbf16>, vector<8x128xf32> -> vector<8x128xf32>
    %c0_42 = arith.constant 0 : index
    %c0_43 = arith.constant 0 : index
    %c0_44 = arith.constant 0 : index
    %112 = vector.load %arg14[%c0_42, %c0_43, %c0_44] : memref<1x1x128xf32, #tpu.memory_space<vmem>>, vector<1x1x128xf32>
    %113 = vector.shape_cast %112 : vector<1x1x128xf32> to vector<1x128xf32>
    %114 = vector.broadcast %113 : vector<1x128xf32> to vector<8x128xf32>
    %115 = arith.addf %111, %114 : vector<8x128xf32>
    %116 = arith.mulf %115, %115 : vector<8x128xf32>
    %117 = arith.mulf %115, %116 : vector<8x128xf32>
    %cst_45 = arith.constant 4.471500e-02 : f32
    %118 = vector.broadcast %cst_45 : f32 to vector<8x128xf32>
    %119 = arith.mulf %118, %117 : vector<8x128xf32>
    %120 = arith.addf %115, %119 : vector<8x128xf32>
    %cst_46 = arith.constant 0.797884583 : f32
    %121 = vector.broadcast %cst_46 : f32 to vector<8x128xf32>
    %122 = arith.mulf %121, %120 : vector<8x128xf32>
    %123 = math.tanh %122 : vector<8x128xf32>
    %cst_47 = arith.constant 1.000000e+00 : f32
    %124 = vector.broadcast %cst_47 : f32 to vector<8x128xf32>
    %125 = arith.addf %124, %123 : vector<8x128xf32>
    %cst_48 = arith.constant 5.000000e-01 : f32
    %126 = vector.broadcast %cst_48 : f32 to vector<8x128xf32>
    %127 = arith.mulf %126, %125 : vector<8x128xf32>
    %128 = arith.mulf %115, %127 : vector<8x128xf32>
    %129 = arith.truncf %128 : vector<8x128xf32> to vector<8x128xbf16>
    %c0_49 = arith.constant 0 : index
    %c0_50 = arith.constant 0 : index
    %c0_51 = arith.constant 0 : index
    %130 = vector.load %arg18[%c0_49, %c0_50, %c0_51] : memref<1x128x32xbf16, #tpu.memory_space<vmem>>, vector<1x128x32xbf16>
    %131 = vector.shape_cast %130 : vector<1x128x32xbf16> to vector<128x32xbf16>
    %cst_52 = arith.constant dense<0.000000e+00> : vector<8x32xf32>
    %132 = tpu.matmul %129, %131, %cst_52 {dimension_numbers = #tpu.dot_dimension_numbers<[1], [0], [0], [1], [0, 0, 1, 1], [], []>} : vector<8x128xbf16>, vector<128x32xbf16>, vector<8x32xf32> -> vector<8x32xf32>
    %133 = vector.broadcast %11 : vector<1x32xf32> to vector<8x32xf32>
    %134 = arith.addf %132, %133 : vector<8x32xf32>
    %135 = arith.addf %85, %134 : vector<8x32xf32>
    %c0_53 = arith.constant 0 : index
    %c0_54 = arith.constant 0 : index
    %136 = vector.load %arg20[%c0_53, %c0_54] : memref<8x32xf32, #tpu.memory_space<vmem>>, vector<8x32xf32>
    tpu.vector_store %arg20[%c0_53, %c0_54], %135 {strides = array<i32>} : memref<8x32xf32, #tpu.memory_space<vmem>>, vector<8x32xf32>,
    %c1_i32 = arith.constant 1 : i32
    %137 = arith.cmpi eq, %arg1, %c1_i32 : i32
    %138 = arith.extui %137 : i1 to i32
    %c0_i32_55 = arith.constant 0 : i32
    %139 = arith.cmpi ne, %138, %c0_i32_55 : i32
    scf.if %139 {
      %c0_56 = arith.constant 0 : index
      %c0_57 = arith.constant 0 : index
      %140 = vector.load %arg9[%c0_56, %c0_57] : memref<1x32xf32, #tpu.memory_space<vmem>>, vector<1x32xf32>
      %c0_58 = arith.constant 0 : index
      %c0_59 = arith.constant 0 : index
      %141 = vector.load %arg10[%c0_58, %c0_59] : memref<1x32xf32, #tpu.memory_space<vmem>>, vector<1x32xf32>
      %cst_60 = arith.constant dense<0.000000e+00> : vector<8xf32>
      %142 = vector.multi_reduction <add>, %135, %cst_60 [1] : vector<8x32xf32> to vector<8xf32>
      %143 = vector.shape_cast %142 : vector<8xf32> to vector<8x1xf32>
      %cst_61 = arith.constant 3.200000e+01 : f32
      %144 = vector.broadcast %cst_61 : f32 to vector<8x1xf32>
      %145 = arith.divf %143, %144 : vector<8x1xf32>
      %146 = vector.broadcast %145 : vector<8x1xf32> to vector<8x32xf32>
      %147 = arith.subf %135, %146 : vector<8x32xf32>
      %148 = arith.mulf %147, %147 : vector<8x32xf32>
      %cst_62 = arith.constant dense<0.000000e+00> : vector<8xf32>
      %149 = vector.multi_reduction <add>, %148, %cst_62 [1] : vector<8x32xf32> to vector<8xf32>
      %150 = vector.shape_cast %149 : vector<8xf32> to vector<8x1xf32>
      %cst_63 = arith.constant 3.200000e+01 : f32
      %151 = vector.broadcast %cst_63 : f32 to vector<8x1xf32>
      %152 = arith.divf %150, %151 : vector<8x1xf32>
      %153 = vector.broadcast %145 : vector<8x1xf32> to vector<8x32xf32>
      %154 = arith.subf %135, %153 : vector<8x32xf32>
      %cst_64 = arith.constant 9.99999974E-6 : f32
      %155 = vector.broadcast %cst_64 : f32 to vector<8x1xf32>
      %156 = arith.addf %152, %155 : vector<8x1xf32>
      %157 = math.rsqrt %156 : vector<8x1xf32>
      %158 = vector.broadcast %157 : vector<8x1xf32> to vector<8x32xf32>
      %159 = arith.mulf %154, %158 : vector<8x32xf32>
      %160 = vector.broadcast %140 : vector<1x32xf32> to vector<8x32xf32>
      %161 = arith.mulf %159, %160 : vector<8x32xf32>
      %162 = vector.broadcast %141 : vector<1x32xf32> to vector<8x32xf32>
      %163 = arith.addf %161, %162 : vector<8x32xf32>
      %164 = arith.truncf %163 : vector<8x32xf32> to vector<8x32xbf16>
      %c0_65 = arith.constant 0 : index
      %c0_66 = arith.constant 0 : index
      %165 = vector.load %arg11[%c0_65, %c0_66] : memref<32x128xbf16, #tpu.memory_space<vmem>>, vector<32x128xbf16>
      %cst_67 = arith.constant dense<0.000000e+00> : vector<8x128xf32>
      %166 = tpu.matmul %164, %165, %cst_67 {dimension_numbers = #tpu.dot_dimension_numbers<[1], [0], [0], [1], [0, 0, 1, 1], [], []>} : vector<8x32xbf16>, vector<32x128xbf16>, vector<8x128xf32> -> vector<8x128xf32>
      %c0_68 = arith.constant 0 : index
      %c0_69 = arith.constant 0 : index
      %167 = vector.load %arg12[%c0_68, %c0_69] : memref<1x128xf32, #tpu.memory_space<vmem>>, vector<1x128xf32>
      %168 = vector.broadcast %167 : vector<1x128xf32> to vector<8x128xf32>
      %169 = arith.addf %166, %168 : vector<8x128xf32>
      %170 = vector.shape_cast %169 : vector<8x128xf32> to vector<1x8x128xf32>
      %c0_70 = arith.constant 0 : index
      %c0_71 = arith.constant 0 : index
      %c0_72 = arith.constant 0 : index
      %171 = vector.load %arg19[%c0_70, %c0_71, %c0_72] : memref<1x8x128xf32, #tpu.memory_space<vmem>>, vector<1x8x128xf32>
      tpu.vector_store %arg19[%c0_70, %c0_71, %c0_72], %170 {strides = array<i32>} : memref<1x8x128xf32, #tpu.memory_space<vmem>>, vector<1x8x128xf32>,
    } else {
    }
    return
  }
  func.func @transform_0(%arg0: i32, %arg1: i32) -> (i32, i32, i32) {
    %c0_i32 = arith.constant 0 : i32
    %c0_i32_0 = arith.constant 0 : i32
    %c0_i32_1 = arith.constant 0 : i32
    return %arg0, %c0_i32, %c0_i32_0 : i32, i32, i32
  }
  func.func @transform_1(%arg0: i32, %arg1: i32) -> (i32, i32) {
    %c0_i32 = arith.constant 0 : i32
    %c0_i32_0 = arith.constant 0 : i32
    %c0_i32_1 = arith.constant 0 : i32
    return %c0_i32, %c0_i32_0 : i32, i32
  }
  func.func @transform_2(%arg0: i32, %arg1: i32) -> (i32, i32) {
    %c0_i32 = arith.constant 0 : i32
    %c0_i32_0 = arith.constant 0 : i32
    %c0_i32_1 = arith.constant 0 : i32
    return %c0_i32, %c0_i32_0 : i32, i32
  }
  func.func @transform_3(%arg0: i32, %arg1: i32) -> (i32, i32) {
    %c0_i32 = arith.constant 0 : i32
    %c0_i32_0 = arith.constant 0 : i32
    %c0_i32_1 = arith.constant 0 : i32
    return %c0_i32, %c0_i32_0 : i32, i32
  }
  func.func @transform_4(%arg0: i32, %arg1: i32) -> (i32, i32) {
    %c0_i32 = arith.constant 0 : i32
    %c0_i32_0 = arith.constant 0 : i32
    %c0_i32_1 = arith.constant 0 : i32
    return %c0_i32, %c0_i32_0 : i32, i32
  }
  func.func @transform_5(%arg0: i32, %arg1: i32) -> (i32, i32) {
    %c0_i32 = arith.constant 0 : i32
    %c0_i32_0 = arith.constant 0 : i32
    %c0_i32_1 = arith.constant 0 : i32
    return %c0_i32, %c0_i32_0 : i32, i32
  }
  func.func @transform_6(%arg0: i32, %arg1: i32) -> (i32, i32) {
    %c0_i32 = arith.constant 0 : i32
    %c0_i32_0 = arith.constant 0 : i32
    %c0_i32_1 = arith.constant 0 : i32
    return %c0_i32, %c0_i32_0 : i32, i32
  }
  func.func @transform_7(%arg0: i32, %arg1: i32) -> (i32, i32) {
    %c0_i32 = arith.constant 0 : i32
    %c0_i32_0 = arith.constant 0 : i32
    %c0_i32_1 = arith.constant 0 : i32
    return %c0_i32, %c0_i32_0 : i32, i32
  }
  func.func @transform_8(%arg0: i32, %arg1: i32) -> (i32, i32) {
    %c0_i32 = arith.constant 0 : i32
    %c0_i32_0 = arith.constant 0 : i32
    %c0_i32_1 = arith.constant 0 : i32
    return %c0_i32, %c0_i32_0 : i32, i32
  }
  func.func @transform_9(%arg0: i32, %arg1: i32) -> (i32, i32) {
    %c0_i32 = arith.constant 0 : i32
    %c0_i32_0 = arith.constant 0 : i32
    %c0_i32_1 = arith.constant 0 : i32
    return %c0_i32, %c0_i32_0 : i32, i32
  }
  func.func @transform_10(%arg0: i32, %arg1: i32) -> (i32, i32) {
    %c0_i32 = arith.constant 0 : i32
    %c0_i32_0 = arith.constant 0 : i32
    %c0_i32_1 = arith.constant 0 : i32
    return %c0_i32, %c0_i32_0 : i32, i32
  }
  func.func @transform_11(%arg0: i32, %arg1: i32) -> (i32, i32, i32) {
    %c0_i32 = arith.constant 0 : i32
    %c0_i32_0 = arith.constant 0 : i32
    %c0_i32_1 = arith.constant 0 : i32
    return %arg1, %c0_i32, %c0_i32_0 : i32, i32, i32
  }
  func.func @transform_12(%arg0: i32, %arg1: i32) -> (i32, i32, i32) {
    %c0_i32 = arith.constant 0 : i32
    %c0_i32_0 = arith.constant 0 : i32
    %c0_i32_1 = arith.constant 0 : i32
    return %arg1, %c0_i32, %c0_i32_0 : i32, i32, i32
  }
  func.func @transform_13(%arg0: i32, %arg1: i32) -> (i32, i32, i32, i32) {
    %c0_i32 = arith.constant 0 : i32
    %c0_i32_0 = arith.constant 0 : i32
    %c0_i32_1 = arith.constant 0 : i32
    %c0_i32_2 = arith.constant 0 : i32
    return %arg1, %c0_i32, %c0_i32_0, %c0_i32_1 : i32, i32, i32, i32
  }
  func.func @transform_14(%arg0: i32, %arg1: i32) -> (i32, i32, i32, i32) {
    %c0_i32 = arith.constant 0 : i32
    %c0_i32_0 = arith.constant 0 : i32
    %c0_i32_1 = arith.constant 0 : i32
    %c0_i32_2 = arith.constant 0 : i32
    return %arg1, %c0_i32, %c0_i32_0, %c0_i32_1 : i32, i32, i32, i32
  }
  func.func @transform_15(%arg0: i32, %arg1: i32) -> (i32, i32, i32) {
    %c0_i32 = arith.constant 0 : i32
    %c0_i32_0 = arith.constant 0 : i32
    %c0_i32_1 = arith.constant 0 : i32
    return %arg1, %c0_i32, %c0_i32_0 : i32, i32, i32
  }
  func.func @transform_16(%arg0: i32, %arg1: i32) -> (i32, i32, i32) {
    %c0_i32 = arith.constant 0 : i32
    %c0_i32_0 = arith.constant 0 : i32
    %c0_i32_1 = arith.constant 0 : i32
    return %arg1, %c0_i32, %c0_i32_0 : i32, i32, i32
  }
  func.func @transform_17(%arg0: i32, %arg1: i32) -> (i32, i32, i32) {
    %c0_i32 = arith.constant 0 : i32
    %c0_i32_0 = arith.constant 0 : i32
    %c0_i32_1 = arith.constant 0 : i32
    return %arg0, %c0_i32, %c0_i32_0 : i32, i32, i32
  }
}

</mosaic_0001>

<llo_original>
// kernel: transformer_encoder_layer.1
$region0: #{transformer_encoder_layer.1}
  #allocation0 [shape = 'u32[]', space=smem, size = 0x4, offset = 0x4, fixed_abs, tag = 'smem constant byte address 0x4 - core index']
  #allocation1 [shape = 'u32[144,128]{1,0:T(1,128)}', space=vmem, size = 0x12000, scoped, tag = 'internal scratch']
  #allocation2 [shape = 'f32[8,32]{1,0:T(8,128)}', space=vmem, size = 0x1000, scoped, tag = 'scratch operand']
  %s0 = inlined_call_operand.vmem [shape: f32[2,8,32], index: 0, kind: input, shape index: {}]
  %s1 = inlined_call_operand.vmem [shape: f32[8,64], index: 1, kind: input, shape index: {}]
  %s2 = inlined_call_operand.vmem [shape: f32[8,64], index: 2, kind: input, shape index: {}]
  %s3 = inlined_call_operand.vmem [shape: bf16[64,64], index: 3, kind: input, shape index: {}]
  %s4 = inlined_call_operand.vmem [shape: f32[8,8], index: 4, kind: input, shape index: {}]
  %s5 = inlined_call_operand.vmem [shape: bf16[32,32], index: 5, kind: input, shape index: {}]
  %s6 = inlined_call_operand.vmem [shape: f32[1,32], index: 6, kind: input, shape index: {}]
  %s7 = inlined_call_operand.vmem [shape: f32[1,32], index: 7, kind: input, shape index: {}]
  %s8 = inlined_call_operand.vmem [shape: f32[1,32], index: 8, kind: input, shape index: {}]
  %s9 = inlined_call_operand.vmem [shape: bf16[32,128], index: 9, kind: input, shape index: {}]
  %s10 = inlined_call_operand.vmem [shape: f32[1,128], index: 10, kind: input, shape index: {}]
  %s11 = inlined_call_operand.vmem [shape: f32[2,8,32], index: 11, kind: input, shape index: {}]
  %s12 = inlined_call_operand.vmem [shape: f32[2,1,128], index: 12, kind: input, shape index: {}]
  %s13 = inlined_call_operand.vmem [shape: bf16[2,6,32,64], index: 13, kind: input, shape index: {}]
  %s14 = inlined_call_operand.vmem [shape: bf16[2,2,64,32], index: 14, kind: input, shape index: {}]
  %s15 = inlined_call_operand.vmem [shape: bf16[2,32,128], index: 15, kind: input, shape index: {}]
  %s16 = inlined_call_operand.vmem [shape: bf16[2,128,32], index: 16, kind: input, shape index: {}]
  %s17 = inlined_call_operand.hbm [shape: f32[2,8,128], index: 17, kind: output, shape index: {}]
  %s18 = sld [smem:[#allocation0]]
  $region109: #{transformer_encoder_layer.1} parent=0
    _
  %s20 = ssub.s32 1, %s18
  %s21 = scalar_select 0, %s20, %s18
  $region1: #{transformer_encoder_layer.1} parent=0
    #allocation3 [shape = 'u8[8192]{0}', space=vmem, size = 0x2000, scoped, tag = 'output window, operand 0']
    #allocation4 [shape = 's32[2]{0}', space=sflag, size = 0x8, scoped, tag = 'scoped memory for transformer_encoder_layer.1']
    %22 = vsyncpa [#allocation4], 0
    %s23 = scalar_lea.sflag [#allocation4], 1
    %24 = vsyncpa %s23, 0
    loop: start=0, step=1, limit=6
    $region2: #{transformer_encoder_layer.1} parent=1 // loop_pre_header
      _
    $region3: #{transformer_encoder_layer.1} parent=1 // loop_header
      %s26 = sphi 0, %s30
      %p27 = scmp.ge.s32.totalorder %s26, 6
      %s33 = sphi 0, %s45
      %s34 = sphi 0, %s41
      %s35 = sphi 0, %s33
      %s36 = sphi 0, %s34
      %s37 = sphi 0, %s35
      %s38 = sphi 0, %s36
      %s48 = sphi 0, %s50
      %s51 = sphi 0, %s48
      %s52 = sphi 0, %s51
      %s68 = sphi 0, %s52
      %s72 = sphi 0, %s72
      %s74 = sphi 0, %s72
      %s75 = sphi 0, %s74
      %s89 = sphi 0, %s75
      %s93 = sphi 0, %s93
      %s95 = sphi 0, %s93
      %s96 = sphi 0, %s95
      %s110 = sphi 0, %s96
      %s114 = sphi 0, %s114
      %s116 = sphi 0, %s114
      %s117 = sphi 0, %s116
      %s131 = sphi 0, %s117
      %s135 = sphi 0, %s135
      %s137 = sphi 0, %s135
      %s138 = sphi 0, %s137
      %s152 = sphi 0, %s138
      %s156 = sphi 0, %s156
      %s158 = sphi 0, %s156
      %s159 = sphi 0, %s158
      %s173 = sphi 0, %s159
      %s177 = sphi 0, %s177
      %s179 = sphi 0, %s177
      %s180 = sphi 0, %s179
      %s194 = sphi 0, %s180
      %s198 = sphi 0, %s198
      %s200 = sphi 0, %s198
      %s201 = sphi 0, %s200
      %s215 = sphi 0, %s201
      %s219 = sphi 0, %s219
      %s221 = sphi 0, %s219
      %s222 = sphi 0, %s221
      %s236 = sphi 0, %s222
      %s240 = sphi 0, %s240
      %s242 = sphi 0, %s240
      %s243 = sphi 0, %s242
      %s257 = sphi 0, %s243
      %s261 = sphi 0, %s261
      %s263 = sphi 0, %s261
      %s264 = sphi 0, %s263
      %s278 = sphi 0, %s264
      %s284 = sphi 0, %s286
      %s287 = sphi 0, %s284
      %s288 = sphi 0, %s287
      %s304 = sphi 0, %s288
      %s310 = sphi 0, %s312
      %s313 = sphi 0, %s310
      %s314 = sphi 0, %s313
      %s330 = sphi 0, %s314
      %s336 = sphi 0, %s338
      %s339 = sphi 0, %s336
      %s340 = sphi 0, %s339
      %s356 = sphi 0, %s340
      %s362 = sphi 0, %s364
      %s365 = sphi 0, %s362
      %s366 = sphi 0, %s365
      %s382 = sphi 0, %s366
      %s388 = sphi 0, %s390
      %s391 = sphi 0, %s388
      %s392 = sphi 0, %s391
      %s408 = sphi 0, %s392
      %s414 = sphi 0, %s416
      %s417 = sphi 0, %s414
      %s418 = sphi 0, %s417
      %s434 = sphi 0, %s418
      %s440 = sphi 0, %s442
      %s443 = sphi 0, %s440
      %s444 = sphi 0, %s443
      %s460 = sphi 0, %s444
    $region4: #{transformer_encoder_layer.1} parent=1 // loop_header_branch
      %29 = sbr.rel (%p27) target = $region8
    $region5: #{transformer_encoder_layer.1} parent=1 // loop_body
      %s31 = ssub.s32 %s26, 1
      %s32 = ssub.s32 %s26, 2
      %s39 = sadd.s32 1, %s34
      %p40 = scmp.ge.s32.totalorder %s39, 2
      %s41 = scalar_select %p40, 0, %s39
      %s42 = sadd.s32 1, %s33
      %s43 = scalar_select %p40, %s42, %s33
      %p44 = scmp.ge.s32.totalorder %s43, 2
      %s45 = scalar_select %p44, 0, %s43
      %s46 = ssub.s32 %s33, %s45
      %p47 = scmp.eq.s32.totalorder %s46, 0
      %s49 = sadd.s32 %s48, 1
      %s50 = scalar_select %p47, %s48, %s49
      %p53 = pneg %p47
      %p54 = scmp.eq.s32.totalorder %s26, 3
      %p55 = por %p53, %p54
      %p56 = scmp.ne.s32.totalorder %s48, %s51
      %p57 = scmp.eq.s32.totalorder %s26, 0
      %p58 = por %p56, %p57
      %p59 = scmp.ne.s32.totalorder %s48, %s51
      %p60 = scmp.eq.s32.totalorder %s31, 3
      %p61 = por %p59, %p60
      %p62 = scmp.ne.s32.totalorder %s51, %s52
      %p63 = scmp.eq.s32.totalorder %s31, 0
      %p64 = por %p62, %p63
      %p65 = scmp.ne.s32.totalorder %s51, %s52
      %p66 = scmp.eq.s32.totalorder %s32, 3
      %p67 = por %p65, %p66
      %p69 = scmp.ne.s32.totalorder %s52, %s68
      %p70 = scmp.eq.s32.totalorder %s32, 0
      %p71 = por %p69, %p70
      %s73 = sadd.s32 %s72, 1
      %p76 = scmp.eq.s32.totalorder %s26, 3
      %p77 = scmp.ne.s32.totalorder %s72, %s74
      %p78 = scmp.eq.s32.totalorder %s26, 0
      %p79 = por %p77, %p78
      %p80 = scmp.ne.s32.totalorder %s72, %s74
      %p81 = scmp.eq.s32.totalorder %s31, 3
      %p82 = por %p80, %p81
      %p83 = scmp.ne.s32.totalorder %s74, %s75
      %p84 = scmp.eq.s32.totalorder %s31, 0
      %p85 = por %p83, %p84
      %p86 = scmp.ne.s32.totalorder %s74, %s75
      %p87 = scmp.eq.s32.totalorder %s32, 3
      %p88 = por %p86, %p87
      %p90 = scmp.ne.s32.totalorder %s75, %s89
      %p91 = scmp.eq.s32.totalorder %s32, 0
      %p92 = por %p90, %p91
      %s94 = sadd.s32 %s93, 1
      %p97 = scmp.eq.s32.totalorder %s26, 3
      %p98 = scmp.ne.s32.totalorder %s93, %s95
      %p99 = scmp.eq.s32.totalorder %s26, 0
      %p100 = por %p98, %p99
      %p101 = scmp.ne.s32.totalorder %s93, %s95
      %p102 = scmp.eq.s32.totalorder %s31, 3
      %p103 = por %p101, %p102
      %p104 = scmp.ne.s32.totalorder %s95, %s96
      %p105 = scmp.eq.s32.totalorder %s31, 0
      %p106 = por %p104, %p105
      %p107 = scmp.ne.s32.totalorder %s95, %s96
      %p108 = scmp.eq.s32.totalorder %s32, 3
      %p109 = por %p107, %p108
      %p111 = scmp.ne.s32.totalorder %s96, %s110
      %p112 = scmp.eq.s32.totalorder %s32, 0
      %p113 = por %p111, %p112
      %s115 = sadd.s32 %s114, 1
      %p118 = scmp.eq.s32.totalorder %s26, 3
      %p119 = scmp.ne.s32.totalorder %s114, %s116
      %p120 = scmp.eq.s32.totalorder %s26, 0
      %p121 = por %p119, %p120
      %p122 = scmp.ne.s32.totalorder %s114, %s116
      %p123 = scmp.eq.s32.totalorder %s31, 3
      %p124 = por %p122, %p123
      %p125 = scmp.ne.s32.totalorder %s116, %s117
      %p126 = scmp.eq.s32.totalorder %s31, 0
      %p127 = por %p125, %p126
      %p128 = scmp.ne.s32.totalorder %s116, %s117
      %p129 = scmp.eq.s32.totalorder %s32, 3
      %p130 = por %p128, %p129
      %p132 = scmp.ne.s32.totalorder %s117, %s131
      %p133 = scmp.eq.s32.totalorder %s32, 0
      %p134 = por %p132, %p133
      %s136 = sadd.s32 %s135, 1
      %p139 = scmp.eq.s32.totalorder %s26, 3
      %p140 = scmp.ne.s32.totalorder %s135, %s137
      %p141 = scmp.eq.s32.totalorder %s26, 0
      %p142 = por %p140, %p141
      %p143 = scmp.ne.s32.totalorder %s135, %s137
      %p144 = scmp.eq.s32.totalorder %s31, 3
      %p145 = por %p143, %p144
      %p146 = scmp.ne.s32.totalorder %s137, %s138
      %p147 = scmp.eq.s32.totalorder %s31, 0
      %p148 = por %p146, %p147
      %p149 = scmp.ne.s32.totalorder %s137, %s138
      %p150 = scmp.eq.s32.totalorder %s32, 3
      %p151 = por %p149, %p150
      %p153 = scmp.ne.s32.totalorder %s138, %s152
      %p154 = scmp.eq.s32.totalorder %s32, 0
      %p155 = por %p153, %p154
      %s157 = sadd.s32 %s156, 1
      %p160 = scmp.eq.s32.totalorder %s26, 3
      %p161 = scmp.ne.s32.totalorder %s156, %s158
      %p162 = scmp.eq.s32.totalorder %s26, 0
      %p163 = por %p161, %p162
      %p164 = scmp.ne.s32.totalorder %s156, %s158
      %p165 = scmp.eq.s32.totalorder %s31, 3
      %p166 = por %p164, %p165
      %p167 = scmp.ne.s32.totalorder %s158, %s159
      %p168 = scmp.eq.s32.totalorder %s31, 0
      %p169 = por %p167, %p168
      %p170 = scmp.ne.s32.totalorder %s158, %s159
      %p171 = scmp.eq.s32.totalorder %s32, 3
      %p172 = por %p170, %p171
      %p174 = scmp.ne.s32.totalorder %s159, %s173
      %p175 = scmp.eq.s32.totalorder %s32, 0
      %p176 = por %p174, %p175
      %s178 = sadd.s32 %s177, 1
      %p181 = scmp.eq.s32.totalorder %s26, 3
      %p182 = scmp.ne.s32.totalorder %s177, %s179
      %p183 = scmp.eq.s32.totalorder %s26, 0
      %p184 = por %p182, %p183
      %p185 = scmp.ne.s32.totalorder %s177, %s179
      %p186 = scmp.eq.s32.totalorder %s31, 3
      %p187 = por %p185, %p186
      %p188 = scmp.ne.s32.totalorder %s179, %s180
      %p189 = scmp.eq.s32.totalorder %s31, 0
      %p190 = por %p188, %p189
      %p191 = scmp.ne.s32.totalorder %s179, %s180
      %p192 = scmp.eq.s32.totalorder %s32, 3
      %p193 = por %p191, %p192
      %p195 = scmp.ne.s32.totalorder %s180, %s194
      %p196 = scmp.eq.s32.totalorder %s32, 0
      %p197 = por %p195, %p196
      %s199 = sadd.s32 %s198, 1
      %p202 = scmp.eq.s32.totalorder %s26, 3
      %p203 = scmp.ne.s32.totalorder %s198, %s200
      %p204 = scmp.eq.s32.totalorder %s26, 0
      %p205 = por %p203, %p204
      %p206 = scmp.ne.s32.totalorder %s198, %s200
      %p207 = scmp.eq.s32.totalorder %s31, 3
      %p208 = por %p206, %p207
      %p209 = scmp.ne.s32.totalorder %s200, %s201
      %p210 = scmp.eq.s32.totalorder %s31, 0
      %p211 = por %p209, %p210
      %p212 = scmp.ne.s32.totalorder %s200, %s201
      %p213 = scmp.eq.s32.totalorder %s32, 3
      %p214 = por %p212, %p213
      %p216 = scmp.ne.s32.totalorder %s201, %s215
      %p217 = scmp.eq.s32.totalorder %s32, 0
      %p218 = por %p216, %p217
      %s220 = sadd.s32 %s219, 1
      %p223 = scmp.eq.s32.totalorder %s26, 3
      %p224 = scmp.ne.s32.totalorder %s219, %s221
      %p225 = scmp.eq.s32.totalorder %s26, 0
      %p226 = por %p224, %p225
      %p227 = scmp.ne.s32.totalorder %s219, %s221
      %p228 = scmp.eq.s32.totalorder %s31, 3
      %p229 = por %p227, %p228
      %p230 = scmp.ne.s32.totalorder %s221, %s222
      %p231 = scmp.eq.s32.totalorder %s31, 0
      %p232 = por %p230, %p231
      %p233 = scmp.ne.s32.totalorder %s221, %s222
      %p234 = scmp.eq.s32.totalorder %s32, 3
      %p235 = por %p233, %p234
      %p237 = scmp.ne.s32.totalorder %s222, %s236
      %p238 = scmp.eq.s32.totalorder %s32, 0
      %p239 = por %p237, %p238
      %s241 = sadd.s32 %s240, 1
      %p244 = scmp.eq.s32.totalorder %s26, 3
      %p245 = scmp.ne.s32.totalorder %s240, %s242
      %p246 = scmp.eq.s32.totalorder %s26, 0
      %p247 = por %p245, %p246
      %p248 = scmp.ne.s32.totalorder %s240, %s242
      %p249 = scmp.eq.s32.totalorder %s31, 3
      %p250 = por %p248, %p249
      %p251 = scmp.ne.s32.totalorder %s242, %s243
      %p252 = scmp.eq.s32.totalorder %s31, 0
      %p253 = por %p251, %p252
      %p254 = scmp.ne.s32.totalorder %s242, %s243
      %p255 = scmp.eq.s32.totalorder %s32, 3
      %p256 = por %p254, %p255
      %p258 = scmp.ne.s32.totalorder %s243, %s257
      %p259 = scmp.eq.s32.totalorder %s32, 0
      %p260 = por %p258, %p259
      %s262 = sadd.s32 %s261, 1
      %p265 = scmp.eq.s32.totalorder %s26, 3
      %p266 = scmp.ne.s32.totalorder %s261, %s263
      %p267 = scmp.eq.s32.totalorder %s26, 0
      %p268 = por %p266, %p267
      %p269 = scmp.ne.s32.totalorder %s261, %s263
      %p270 = scmp.eq.s32.totalorder %s31, 3
      %p271 = por %p269, %p270
      %p272 = scmp.ne.s32.totalorder %s263, %s264
      %p273 = scmp.eq.s32.totalorder %s31, 0
      %p274 = por %p272, %p273
      %p275 = scmp.ne.s32.totalorder %s263, %s264
      %p276 = scmp.eq.s32.totalorder %s32, 3
      %p277 = por %p275, %p276
      %p279 = scmp.ne.s32.totalorder %s264, %s278
      %p280 = scmp.eq.s32.totalorder %s32, 0
      %p281 = por %p279, %p280
      %s282 = ssub.s32 %s34, %s41
      %p283 = scmp.eq.s32.totalorder %s282, 0
      %s285 = sadd.s32 %s284, 1
      %s286 = scalar_select %p283, %s284, %s285
      %p289 = pneg %p283
      %p290 = scmp.eq.s32.totalorder %s26, 3
      %p291 = por %p289, %p290
      %p292 = scmp.ne.s32.totalorder %s284, %s287
      %p293 = scmp.eq.s32.totalorder %s26, 0
      %p294 = por %p292, %p293
      %p295 = scmp.ne.s32.totalorder %s284, %s287
      %p296 = scmp.eq.s32.totalorder %s31, 3
      %p297 = por %p295, %p296
      %p298 = scmp.ne.s32.totalorder %s287, %s288
      %p299 = scmp.eq.s32.totalorder %s31, 0
      %p300 = por %p298, %p299
      %p301 = scmp.ne.s32.totalorder %s287, %s288
      %p302 = scmp.eq.s32.totalorder %s32, 3
      %p303 = por %p301, %p302
      %p305 = scmp.ne.s32.totalorder %s288, %s304
      %p306 = scmp.eq.s32.totalorder %s32, 0
      %p307 = por %p305, %p306
      %s308 = ssub.s32 %s34, %s41
      %p309 = scmp.eq.s32.totalorder %s308, 0
      %s311 = sadd.s32 %s310, 1
      %s312 = scalar_select %p309, %s310, %s311
      %p315 = pneg %p309
      %p316 = scmp.eq.s32.totalorder %s26, 3
      %p317 = por %p315, %p316
      %p318 = scmp.ne.s32.totalorder %s310, %s313
      %p319 = scmp.eq.s32.totalorder %s26, 0
      %p320 = por %p318, %p319
      %p321 = scmp.ne.s32.totalorder %s310, %s313
      %p322 = scmp.eq.s32.totalorder %s31, 3
      %p323 = por %p321, %p322
      %p324 = scmp.ne.s32.totalorder %s313, %s314
      %p325 = scmp.eq.s32.totalorder %s31, 0
      %p326 = por %p324, %p325
      %p327 = scmp.ne.s32.totalorder %s313, %s314
      %p328 = scmp.eq.s32.totalorder %s32, 3
      %p329 = por %p327, %p328
      %p331 = scmp.ne.s32.totalorder %s314, %s330
      %p332 = scmp.eq.s32.totalorder %s32, 0
      %p333 = por %p331, %p332
      %s334 = ssub.s32 %s34, %s41
      %p335 = scmp.eq.s32.totalorder %s334, 0
      %s337 = sadd.s32 %s336, 1
      %s338 = scalar_select %p335, %s336, %s337
      %p341 = pneg %p335
      %p342 = scmp.eq.s32.totalorder %s26, 3
      %p343 = por %p341, %p342
      %p344 = scmp.ne.s32.totalorder %s336, %s339
      %p345 = scmp.eq.s32.totalorder %s26, 0
      %p346 = por %p344, %p345
      %p347 = scmp.ne.s32.totalorder %s336, %s339
      %p348 = scmp.eq.s32.totalorder %s31, 3
      %p349 = por %p347, %p348
      %p350 = scmp.ne.s32.totalorder %s339, %s340
      %p351 = scmp.eq.s32.totalorder %s31, 0
      %p352 = por %p350, %p351
      %p353 = scmp.ne.s32.totalorder %s339, %s340
      %p354 = scmp.eq.s32.totalorder %s32, 3
      %p355 = por %p353, %p354
      %p357 = scmp.ne.s32.totalorder %s340, %s356
      %p358 = scmp.eq.s32.totalorder %s32, 0
      %p359 = por %p357, %p358
      %s360 = ssub.s32 %s34, %s41
      %p361 = scmp.eq.s32.totalorder %s360, 0
      %s363 = sadd.s32 %s362, 1
      %s364 = scalar_select %p361, %s362, %s363
      %p367 = pneg %p361
      %p368 = scmp.eq.s32.totalorder %s26, 3
      %p369 = por %p367, %p368
      %p370 = scmp.ne.s32.totalorder %s362, %s365
      %p371 = scmp.eq.s32.totalorder %s26, 0
      %p372 = por %p370, %p371
      %p373 = scmp.ne.s32.totalorder %s362, %s365
      %p374 = scmp.eq.s32.totalorder %s31, 3
      %p375 = por %p373, %p374
      %p376 = scmp.ne.s32.totalorder %s365, %s366
      %p377 = scmp.eq.s32.totalorder %s31, 0
      %p378 = por %p376, %p377
      %p379 = scmp.ne.s32.totalorder %s365, %s366
      %p380 = scmp.eq.s32.totalorder %s32, 3
      %p381 = por %p379, %p380
      %p383 = scmp.ne.s32.totalorder %s366, %s382
      %p384 = scmp.eq.s32.totalorder %s32, 0
      %p385 = por %p383, %p384
      %s386 = ssub.s32 %s34, %s41
      %p387 = scmp.eq.s32.totalorder %s386, 0
      %s389 = sadd.s32 %s388, 1
      %s390 = scalar_select %p387, %s388, %s389
      %p393 = pneg %p387
      %p394 = scmp.eq.s32.totalorder %s26, 3
      %p395 = por %p393, %p394
      %p396 = scmp.ne.s32.totalorder %s388, %s391
      %p397 = scmp.eq.s32.totalorder %s26, 0
      %p398 = por %p396, %p397
      %p399 = scmp.ne.s32.totalorder %s388, %s391
      %p400 = scmp.eq.s32.totalorder %s31, 3
      %p401 = por %p399, %p400
      %p402 = scmp.ne.s32.totalorder %s391, %s392
      %p403 = scmp.eq.s32.totalorder %s31, 0
      %p404 = por %p402, %p403
      %p405 = scmp.ne.s32.totalorder %s391, %s392
      %p406 = scmp.eq.s32.totalorder %s32, 3
      %p407 = por %p405, %p406
      %p409 = scmp.ne.s32.totalorder %s392, %s408
      %p410 = scmp.eq.s32.totalorder %s32, 0
      %p411 = por %p409, %p410
      %s412 = ssub.s32 %s34, %s41
      %p413 = scmp.eq.s32.totalorder %s412, 0
      %s415 = sadd.s32 %s414, 1
      %s416 = scalar_select %p413, %s414, %s415
      %p419 = pneg %p413
      %p420 = scmp.eq.s32.totalorder %s26, 3
      %p421 = por %p419, %p420
      %p422 = scmp.ne.s32.totalorder %s414, %s417
      %p423 = scmp.eq.s32.totalorder %s26, 0
      %p424 = por %p422, %p423
      %p425 = scmp.ne.s32.totalorder %s414, %s417
      %p426 = scmp.eq.s32.totalorder %s31, 3
      %p427 = por %p425, %p426
      %p428 = scmp.ne.s32.totalorder %s417, %s418
      %p429 = scmp.eq.s32.totalorder %s31, 0
      %p430 = por %p428, %p429
      %p431 = scmp.ne.s32.totalorder %s417, %s418
      %p432 = scmp.eq.s32.totalorder %s32, 3
      %p433 = por %p431, %p432
      %p435 = scmp.ne.s32.totalorder %s418, %s434
      %p436 = scmp.eq.s32.totalorder %s32, 0
      %p437 = por %p435, %p436
      %s438 = ssub.s32 %s33, %s45
      %p439 = scmp.eq.s32.totalorder %s438, 0
      %s441 = sadd.s32 %s440, 1
      %s442 = scalar_select %p439, %s440, %s441
      %p445 = pneg %p439
      %p446 = scmp.eq.s32.totalorder %s26, 3
      %p447 = por %p445, %p446
      %p448 = scmp.ne.s32.totalorder %s440, %s443
      %p449 = scmp.eq.s32.totalorder %s26, 0
      %p450 = por %p448, %p449
      %p451 = scmp.ne.s32.totalorder %s440, %s443
      %p452 = scmp.eq.s32.totalorder %s31, 3
      %p453 = por %p451, %p452
      %p454 = scmp.ne.s32.totalorder %s443, %s444
      %p455 = scmp.eq.s32.totalorder %s31, 0
      %p456 = por %p454, %p455
      %p457 = scmp.ne.s32.totalorder %s443, %s444
      %p458 = scmp.eq.s32.totalorder %s32, 3
      %p459 = por %p457, %p458
      %p461 = scmp.ne.s32.totalorder %s444, %s460
      %p462 = scmp.eq.s32.totalorder %s32, 0
      %p463 = por %p461, %p462
      %p464 = scmp.le.s32.totalorder 1, %s26
      %p465 = scmp.lt.s32.totalorder %s26, 5
      %p466 = pnand %p464, %p465
      %p467 = pneg %p466
      // Predicated region
      $region9: #{transformer_encoder_layer.1} parent=5 // pred_check
        _
      $region10: #{transformer_encoder_layer.1} parent=5 // pred_check_branch
        %469 = sbr.rel (%p466) target = $region12
      $region11: #{transformer_encoder_layer.1} parent=5 // pred_region
        %s470 = ssub.s32 %s26, 1
        // Predicated region
        $region13: #{transformer_encoder_layer.1} parent=11 // pred_check
          %p471 = pneg %p85
        $region14: #{transformer_encoder_layer.1} parent=11 // pred_check_branch
          %473 = sbr.rel (%p471) target = $region16
        $region15: #{transformer_encoder_layer.1} parent=11 // pred_region
          _
        $region16: #{transformer_encoder_layer.1} parent=11 // pred_fallthru
          _
        // Predicated region
        $region17: #{transformer_encoder_layer.1} parent=11 // pred_check
          %p474 = pneg %p106
        $region18: #{transformer_encoder_layer.1} parent=11 // pred_check_branch
          %476 = sbr.rel (%p474) target = $region20
        $region19: #{transformer_encoder_layer.1} parent=11 // pred_region
          _
        $region20: #{transformer_encoder_layer.1} parent=11 // pred_fallthru
          _
        // Predicated region
        $region21: #{transformer_encoder_layer.1} parent=11 // pred_check
          %p477 = pneg %p127
        $region22: #{transformer_encoder_layer.1} parent=11 // pred_check_branch
          %479 = sbr.rel (%p477) target = $region24
        $region23: #{transformer_encoder_layer.1} parent=11 // pred_region
          _
        $region24: #{transformer_encoder_layer.1} parent=11 // pred_fallthru
          _
        // Predicated region
        $region25: #{transformer_encoder_layer.1} parent=11 // pred_check
          %p480 = pneg %p148
        $region26: #{transformer_encoder_layer.1} parent=11 // pred_check_branch
          %482 = sbr.rel (%p480) target = $region28
        $region27: #{transformer_encoder_layer.1} parent=11 // pred_region
          _
        $region28: #{transformer_encoder_layer.1} parent=11 // pred_fallthru
          _
        // Predicated region
        $region29: #{transformer_encoder_layer.1} parent=11 // pred_check
          %p483 = pneg %p169
        $region30: #{transformer_encoder_layer.1} parent=11 // pred_check_branch
          %485 = sbr.rel (%p483) target = $region32
        $region31: #{transformer_encoder_layer.1} parent=11 // pred_region
          _
        $region32: #{transformer_encoder_layer.1} parent=11 // pred_fallthru
          _
        // Predicated region
        $region33: #{transformer_encoder_layer.1} parent=11 // pred_check
          %p486 = pneg %p190
        $region34: #{transformer_encoder_layer.1} parent=11 // pred_check_branch
          %488 = sbr.rel (%p486) target = $region36
        $region35: #{transformer_encoder_layer.1} parent=11 // pred_region
          _
        $region36: #{transformer_encoder_layer.1} parent=11 // pred_fallthru
          _
        // Predicated region
        $region37: #{transformer_encoder_layer.1} parent=11 // pred_check
          %p489 = pneg %p211
        $region38: #{transformer_encoder_layer.1} parent=11 // pred_check_branch
          %491 = sbr.rel (%p489) target = $region40
        $region39: #{transformer_encoder_layer.1} parent=11 // pred_region
          _
        $region40: #{transformer_encoder_layer.1} parent=11 // pred_fallthru
          _
        // Predicated region
        $region41: #{transformer_encoder_layer.1} parent=11 // pred_check
          %p492 = pneg %p232
        $region42: #{transformer_encoder_layer.1} parent=11 // pred_check_branch
          %494 = sbr.rel (%p492) target = $region44
        $region43: #{transformer_encoder_layer.1} parent=11 // pred_region
          _
        $region44: #{transformer_encoder_layer.1} parent=11 // pred_fallthru
          _
        // Predicated region
        $region45: #{transformer_encoder_layer.1} parent=11 // pred_check
          %p495 = pneg %p253
        $region46: #{transformer_encoder_layer.1} parent=11 // pred_check_branch
          %497 = sbr.rel (%p495) target = $region48
        $region47: #{transformer_encoder_layer.1} parent=11 // pred_region
          _
        $region48: #{transformer_encoder_layer.1} parent=11 // pred_fallthru
          _
        // Predicated region
        $region49: #{transformer_encoder_layer.1} parent=11 // pred_check
          %p498 = pneg %p274
        $region50: #{transformer_encoder_layer.1} parent=11 // pred_check_branch
          %500 = sbr.rel (%p498) target = $region52
        $region51: #{transformer_encoder_layer.1} parent=11 // pred_region
          _
        $region52: #{transformer_encoder_layer.1} parent=11 // pred_fallthru
          _
      $region12: #{transformer_encoder_layer.1} parent=5 // pred_fallthru
        _
      %p501 = scmp.lt.s32.totalorder %s26, 4
      // Predicated region
      $region53: #{transformer_encoder_layer.1} parent=5 // pred_check
        %p502 = pneg %p501
      $region54: #{transformer_encoder_layer.1} parent=5 // pred_check_branch
        %504 = sbr.rel (%p502) target = $region56
      $region55: #{transformer_encoder_layer.1} parent=5 // pred_region
        // Predicated region
        $region57: #{transformer_encoder_layer.1} parent=55 // pred_check
          %p505 = pneg %p58
        $region58: #{transformer_encoder_layer.1} parent=55 // pred_check_branch
          %507 = sbr.rel (%p505) target = $region60
        $region59: #{transformer_encoder_layer.1} parent=55 // pred_region
          %p508 = scmp.lt.s32.totalorder %s33, 1
          %s509 = scalar_select %p508, %s33, 1
          %s510 = smul.addr %s509, 8
          %s511 = scalar_lea.vmem %s0, %s510
        $region60: #{transformer_encoder_layer.1} parent=55 // pred_fallthru
          _
        // Predicated region
        $region61: #{transformer_encoder_layer.1} parent=55 // pred_check
          %p512 = pneg %p294
        $region62: #{transformer_encoder_layer.1} parent=55 // pred_check_branch
          %514 = sbr.rel (%p512) target = $region64
        $region63: #{transformer_encoder_layer.1} parent=55 // pred_region
          %p515 = scmp.lt.s32.totalorder %s34, 1
          %s516 = scalar_select %p515, %s34, 1
          %s517 = smul.addr %s516, 8
          %s518 = scalar_lea.vmem %s11, %s517
        $region64: #{transformer_encoder_layer.1} parent=55 // pred_fallthru
          _
        // Predicated region
        $region65: #{transformer_encoder_layer.1} parent=55 // pred_check
          %p519 = pneg %p320
        $region66: #{transformer_encoder_layer.1} parent=55 // pred_check_branch
          %521 = sbr.rel (%p519) target = $region68
        $region67: #{transformer_encoder_layer.1} parent=55 // pred_region
          %p522 = scmp.lt.s32.totalorder %s34, 1
          %s523 = scalar_select %p522, %s34, 1
          %s524 = scalar_lea.vmem %s12, %s523
        $region68: #{transformer_encoder_layer.1} parent=55 // pred_fallthru
          _
        // Predicated region
        $region69: #{transformer_encoder_layer.1} parent=55 // pred_check
          %p525 = pneg %p346
        $region70: #{transformer_encoder_layer.1} parent=55 // pred_check_branch
          %527 = sbr.rel (%p525) target = $region72
        $region71: #{transformer_encoder_layer.1} parent=55 // pred_region
          %p528 = scmp.lt.s32.totalorder %s34, 1
          %s529 = scalar_select %p528, %s34, 1
          %s530 = smul.addr %s529, 24
          %s531 = smul.addr %s530, 4
          %s532 = scalar_lea.vmem %s13, %s531
        $region72: #{transformer_encoder_layer.1} parent=55 // pred_fallthru
          _
        // Predicated region
        $region73: #{transformer_encoder_layer.1} parent=55 // pred_check
          %p533 = pneg %p372
        $region74: #{transformer_encoder_layer.1} parent=55 // pred_check_branch
          %535 = sbr.rel (%p533) target = $region76
        $region75: #{transformer_encoder_layer.1} parent=55 // pred_region
          %p536 = scmp.lt.s32.totalorder %s34, 1
          %s537 = scalar_select %p536, %s34, 1
          %s538 = smul.addr %s537, 16
          %s539 = smul.addr %s538, 4
          %s540 = scalar_lea.vmem %s14, %s539
        $region76: #{transformer_encoder_layer.1} parent=55 // pred_fallthru
          _
        // Predicated region
        $region77: #{transformer_encoder_layer.1} parent=55 // pred_check
          %p541 = pneg %p398
        $region78: #{transformer_encoder_layer.1} parent=55 // pred_check_branch
          %543 = sbr.rel (%p541) target = $region80
        $region79: #{transformer_encoder_layer.1} parent=55 // pred_region
          %p544 = scmp.lt.s32.totalorder %s34, 1
          %s545 = scalar_select %p544, %s34, 1
          %s546 = smul.addr %s545, 4
          %s547 = smul.addr %s546, 4
          %s548 = scalar_lea.vmem %s15, %s547
        $region80: #{transformer_encoder_layer.1} parent=55 // pred_fallthru
          _
        // Predicated region
        $region81: #{transformer_encoder_layer.1} parent=55 // pred_check
          %p549 = pneg %p424
        $region82: #{transformer_encoder_layer.1} parent=55 // pred_check_branch
          %551 = sbr.rel (%p549) target = $region84
        $region83: #{transformer_encoder_layer.1} parent=55 // pred_region
          %p552 = scmp.lt.s32.totalorder %s34, 1
          %s553 = scalar_select %p552, %s34, 1
          %s554 = smul.addr %s553, 16
          %s555 = smul.addr %s554, 4
          %s556 = scalar_lea.vmem %s16, %s555
        $region84: #{transformer_encoder_layer.1} parent=55 // pred_fallthru
          _
      $region56: #{transformer_encoder_layer.1} parent=5 // pred_fallthru
        _
      %p557 = scmp.le.s32.totalorder 1, %s26
      %p558 = scmp.lt.s32.totalorder %s26, 5
      %p559 = pnand %p557, %p558
      %p560 = pneg %p559
      // Predicated region
      $region85: #{transformer_encoder_layer.1} parent=5 // pred_check
        _
      $region86: #{transformer_encoder_layer.1} parent=5 // pred_check_branch
        %562 = sbr.rel (%p559) target = $region88
      $region87: #{transformer_encoder_layer.1} parent=5 // pred_region
        %s563 = ssub.s32 %s26, 1
        %p564 = scmp.lt.s32.totalorder %s35, 1
        %s565 = scalar_select %p564, %s35, 1
        %s566 = smul.addr %s565, 8
        %s567 = scalar_lea.vmem %s0, %s566
        %p568 = pneg %p64
        %p569 = pneg %p61
        %p570 = pneg %p85
        %p571 = pneg %p82
        %p572 = pneg %p106
        %p573 = pneg %p103
        %p574 = pneg %p127
        %p575 = pneg %p124
        %p576 = pneg %p148
        %p577 = pneg %p145
        %p578 = pneg %p169
        %p579 = pneg %p166
        %p580 = pneg %p190
        %p581 = pneg %p187
        %p582 = pneg %p211
        %p583 = pneg %p208
        %p584 = pneg %p232
        %p585 = pneg %p229
        %p586 = pneg %p253
        %p587 = pneg %p250
        %p588 = pneg %p274
        %p589 = pneg %p271
        %p590 = scmp.lt.s32.totalorder %s36, 1
        %s591 = scalar_select %p590, %s36, 1
        %s592 = smul.addr %s591, 8
        %s593 = scalar_lea.vmem %s11, %s592
        %p594 = pneg %p300
        %p595 = pneg %p297
        %p596 = scmp.lt.s32.totalorder %s36, 1
        %s597 = scalar_select %p596, %s36, 1
        %s598 = scalar_lea.vmem %s12, %s597
        %p599 = pneg %p326
        %p600 = pneg %p323
        %p601 = scmp.lt.s32.totalorder %s36, 1
        %s602 = scalar_select %p601, %s36, 1
        %s603 = smul.addr %s602, 24
        %s604 = smul.addr %s603, 4
        %s605 = scalar_lea.vmem %s13, %s604
        %p606 = pneg %p352
        %p607 = pneg %p349
        %p608 = scmp.lt.s32.totalorder %s36, 1
        %s609 = scalar_select %p608, %s36, 1
        %s610 = smul.addr %s609, 16
        %s611 = smul.addr %s610, 4
        %s612 = scalar_lea.vmem %s14, %s611
        %p613 = pneg %p378
        %p614 = pneg %p375
        %p615 = scmp.lt.s32.totalorder %s36, 1
        %s616 = scalar_select %p615, %s36, 1
        %s617 = smul.addr %s616, 4
        %s618 = smul.addr %s617, 4
        %s619 = scalar_lea.vmem %s15, %s618
        %p620 = pneg %p404
        %p621 = pneg %p401
        %p622 = scmp.lt.s32.totalorder %s36, 1
        %s623 = scalar_select %p622, %s36, 1
        %s624 = smul.addr %s623, 16
        %s625 = smul.addr %s624, 4
        %s626 = scalar_lea.vmem %s16, %s625
        %p627 = pneg %p430
        %p628 = pneg %p427
        %p629 = pneg %p456
        %p630 = pneg %p453
        %s631 = sand.u32 %s443, 1
        %s632 = scalar_lea.sflag [#allocation4], %s631
        %s633 = sand.u32 %s443, 1
        %s634 = smul.addr %s633, 8
        %s635 = scalar_lea.vmem [#allocation3], %s634
        %p636 = scmp.lt.s32.totalorder %s35, 1
        %s637 = scalar_select %p636, %s35, 1
        %s638 = smul.addr %s637, 8
        %s639 = scalar_lea.vmem %s0, %s638
        %p640 = scmp.lt.s32.totalorder %s36, 1
        %s641 = scalar_select %p640, %s36, 1
        %s642 = smul.addr %s641, 8
        %s643 = scalar_lea.vmem %s11, %s642
        %p644 = scmp.lt.s32.totalorder %s36, 1
        %s645 = scalar_select %p644, %s36, 1
        %s646 = scalar_lea.vmem %s12, %s645
        %p647 = scmp.lt.s32.totalorder %s36, 1
        %s648 = scalar_select %p647, %s36, 1
        %s649 = smul.addr %s648, 24
        %s650 = smul.addr %s649, 4
        %s651 = scalar_lea.vmem %s13, %s650
        %p652 = scmp.lt.s32.totalorder %s36, 1
        %s653 = scalar_select %p652, %s36, 1
        %s654 = smul.addr %s653, 16
        %s655 = smul.addr %s654, 4
        %s656 = scalar_lea.vmem %s14, %s655
        %p657 = scmp.lt.s32.totalorder %s36, 1
        %s658 = scalar_select %p657, %s36, 1
        %s659 = smul.addr %s658, 4
        %s660 = smul.addr %s659, 4
        %s661 = scalar_lea.vmem %s15, %s660
        %p662 = scmp.lt.s32.totalorder %s36, 1
        %s663 = scalar_select %p662, %s36, 1
        %s664 = smul.addr %s663, 16
        %s665 = smul.addr %s664, 4
        %s666 = scalar_lea.vmem %s16, %s665
        %p668 = scmp.eq.s32.totalorder %s36, 0
        // Predicated region
        $region89: #{transformer_encoder_layer.1} parent=87 // pred_check
          %p669 = pneg %p668
        $region90: #{transformer_encoder_layer.1} parent=87 // pred_check_branch
          %671 = sbr.rel (%p669) target = $region92
        $region91: #{transformer_encoder_layer.1} parent=87 // pred_region
          %v672 = vld [vmem:[%s639] sm:$0xff]
          %v673 = vpack.c.bf16 %v672, %v672
          %v674 = vld [vmem:[%s5] sm:$0xf]
          %v675 = vld [vmem:[%s5 + $0x4] sm:$0xf]
          %v676 = vld [vmem:[%s5 + $0x8] sm:$0xf]
          %v677 = vld [vmem:[%s5 + $0xc] sm:$0xf]
          %v678 = vld [vmem:[%s6] sm:$0x1]
          %v680 = vlaneseq
          %v681 = vshrl.u32 %v680, 7
          %v682 = vsub.s32 0, %v681
          %v683 = vrot.slane %v678, %v682
          %v689 = vunpack.c.l.b16 %v674
          %v690 = vunpack.c.l.b16 %v675
          %v691 = vunpack.c.l.b16 %v676
          %v692 = vunpack.c.l.b16 %v677
          %v693 = vpack.c.b16 %v690, %v689
          %v694 = vpack.c.b16 %v692, %v691
          %vm697 = vcmask 261120
          %v699 = vsel %vm697, %v673, 0
          %701 = vmatprep.subr.bf16.mxu0 0
          %702 = vmatpush1.bf16.msra.mxu0 0
          %703 = vmatprep.subr.bf16.mxu0 0
          %704 = vmatpush1.bf16.msra.mxu0 0
          %705 = vmatprep.subr.bf16.mxu0 0
          %706 = vmatpush1.bf16.msra.mxu0 0
          %707 = vmatprep.subr.bf16.mxu0 0
          %708 = vmatpush1.bf16.msra.mxu0 0
          %709 = vmatprep.subr.bf16.mxu0 0
          %710 = vmatpush1.bf16.msra.mxu0 0
          %711 = vmatprep.subr.bf16.mxu0 0
          %712 = vmatpush1.bf16.msra.mxu0 0
          %713 = vmatprep.subr.bf16.mxu0 0
          %714 = vmatpush1.bf16.msra.mxu0 %v694
          %715 = vmatprep.subr.bf16.mxu0 0
          %716 = vmatpush1.bf16.msra.mxu0 %v693
          %717 = vmatprep.subr.bf16.mxu0 0
          %718 = vmatpush2.bf16.msra.mxu0 0
          %719 = vmatprep.subr.bf16.mxu0 0
          %720 = vmatpush2.bf16.msra.mxu0 0
          %721 = vmatprep.subr.bf16.mxu0 0
          %722 = vmatpush2.bf16.msra.mxu0 0
          %723 = vmatprep.subr.bf16.mxu0 0
          %724 = vmatpush2.bf16.msra.mxu0 0
          %725 = vmatprep.subr.bf16.mxu0 0
          %726 = vmatpush2.bf16.msra.mxu0 0
          %727 = vmatprep.subr.bf16.mxu0 0
          %728 = vmatpush2.bf16.msra.mxu0 0
          %729 = vmatprep.subr.bf16.mxu0 0
          %730 = vmatpush2.bf16.msra.mxu0 0
          %731 = vmatprep.subr.bf16.mxu0 0
          %732 = vmatpush2.bf16.msra.mxu0 0
          %733 = vmatprep.mubr.bf16.mxu0 0
          %734 = vmatmul.mubr.bf16.gmra.mxu0 %v699
          %v735 = vpop.f32.mrf.mxu0
          %v736 = vadd.f32 %v683, %v735
          %v737 = vpop.f32.mrf.mxu0
          %v738 = vpop.f32.mrf.mxu0
          %v739 = vpop.f32.mrf.mxu0
          %740 = vdwg.mxu0
          %741 = vst.msk [vmem:[#allocation2] sm:$0xff] %vm697, %v736
        $region92: #{transformer_encoder_layer.1} parent=87 // pred_fallthru
          _
        %v742 = vld [vmem:[#allocation2] sm:$0xff]
        %v743 = vld [vmem:[%s643] sm:$0xff]
        %vm744 = vcmask 261120
        %v745 = vsel %vm744, %v742, 0.0
        %746 = vadd.xlane.f32.xlu0 %v745
        %v747 = vpop.xlane.xlu0 %746
        %v748 = vrcp.pop 32.0
        %v749 = vmul.f32 %v747, %v748
        %v750 = vsub.f32 %v742, %v749
        %v751 = vmul.f32 %v750, %v750
        %v752 = vsel %vm744, %v751, 0.0
        %753 = vadd.xlane.f32.xlu0 %v752
        %v754 = vpop.xlane.xlu0 %753
        %v755 = vmul.f32 %v754, %v748
        %v756 = vadd.f32 %v755, 1e-05
        %v757 = vrsqrt.pop %v756
        %v758 = vmul.f32 %v750, %v757
        %v759 = vlaneseq
        %v760 = vshrl.u32 %v759, 7
        %v761 = vsub.s32 0, %v760
        %v762 = vrot.slane %v743, %v761
        %v763 = vmul.f32 %v758, %v762
        %v764 = vlaneseq
        %v765 = vshrl.u32 %v764, 7
        %v766 = vsub.s32 1, %v765
        %v767 = vrot.slane %v743, %v766
        %v768 = vadd.f32 %v763, %v767
        %v769 = vpack.c.bf16 %v768, %v768
        %v770 = vld [vmem:[%s651] sm:$0xf]
        %v771 = vld [vmem:[%s651 + $0x4] sm:$0xf]
        %v772 = vld [vmem:[%s651 + $0x8] sm:$0xf]
        %v773 = vld [vmem:[%s651 + $0xc] sm:$0xf]
        %v774 = vld [vmem:[%s651 + $0x10] sm:$0xf]
        %v775 = vld [vmem:[%s651 + $0x14] sm:$0xf]
        %v776 = vld [vmem:[%s651 + $0x18] sm:$0xf]
        %v777 = vld [vmem:[%s651 + $0x1c] sm:$0xf]
        %v778 = vld [vmem:[%s651 + $0x20] sm:$0xf]
        %v779 = vld [vmem:[%s651 + $0x24] sm:$0xf]
        %v780 = vld [vmem:[%s651 + $0x28] sm:$0xf]
        %v781 = vld [vmem:[%s651 + $0x2c] sm:$0xf]
        %v782 = vld [vmem:[%s651 + $0x30] sm:$0xf]
        %v783 = vld [vmem:[%s651 + $0x34] sm:$0xf]
        %v784 = vld [vmem:[%s651 + $0x38] sm:$0xf]
        %v785 = vld [vmem:[%s651 + $0x3c] sm:$0xf]
        %v786 = vld [vmem:[%s651 + $0x40] sm:$0xf]
        %v787 = vld [vmem:[%s651 + $0x44] sm:$0xf]
        %v788 = vld [vmem:[%s651 + $0x48] sm:$0xf]
        %v789 = vld [vmem:[%s651 + $0x4c] sm:$0xf]
        %v790 = vld [vmem:[%s651 + $0x50] sm:$0xf]
        %v791 = vld [vmem:[%s651 + $0x54] sm:$0xf]
        %v792 = vld [vmem:[%s651 + $0x58] sm:$0xf]
        %v793 = vld [vmem:[%s651 + $0x5c] sm:$0xf]
        %v798 = vunpack.c.l.b16 %v770
        %v799 = vunpack.c.l.b16 %v771
        %v800 = vunpack.c.l.b16 %v772
        %v801 = vunpack.c.l.b16 %v773
        %v802 = vpack.c.b16 %v799, %v798
        %v803 = vpack.c.b16 %v801, %v800
        %v807 = vsel %vm744, %v769, 0
        %809 = vmatprep.subr.bf16.mxu0 0
        %810 = vmatpush1.bf16.msra.mxu0 0
        %811 = vmatprep.subr.bf16.mxu0 0
        %812 = vmatpush1.bf16.msra.mxu0 0
        %813 = vmatprep.subr.bf16.mxu0 0
        %814 = vmatpush1.bf16.msra.mxu0 0
        %815 = vmatprep.subr.bf16.mxu0 0
        %816 = vmatpush1.bf16.msra.mxu0 0
        %817 = vmatprep.subr.bf16.mxu0 0
        %818 = vmatpush1.bf16.msra.mxu0 0
        %819 = vmatprep.subr.bf16.mxu0 0
        %820 = vmatpush1.bf16.msra.mxu0 0
        %821 = vmatprep.subr.bf16.mxu0 0
        %822 = vmatpush1.bf16.msra.mxu0 %v803
        %823 = vmatprep.subr.bf16.mxu0 0
        %824 = vmatpush1.bf16.msra.mxu0 %v802
        %825 = vmatprep.subr.bf16.mxu0 0
        %826 = vmatpush2.bf16.msra.mxu0 0
        %827 = vmatprep.subr.bf16.mxu0 0
        %828 = vmatpush2.bf16.msra.mxu0 0
        %829 = vmatprep.subr.bf16.mxu0 0
        %830 = vmatpush2.bf16.msra.mxu0 0
        %831 = vmatprep.subr.bf16.mxu0 0
        %832 = vmatpush2.bf16.msra.mxu0 0
        %833 = vmatprep.subr.bf16.mxu0 0
        %834 = vmatpush2.bf16.msra.mxu0 0
        %835 = vmatprep.subr.bf16.mxu0 0
        %836 = vmatpush2.bf16.msra.mxu0 0
        %837 = vmatprep.subr.bf16.mxu0 0
        %838 = vmatpush2.bf16.msra.mxu0 0
        %839 = vmatprep.subr.bf16.mxu0 0
        %840 = vmatpush2.bf16.msra.mxu0 0
        %841 = vmatprep.mubr.bf16.mxu0 0
        %842 = vmatmul.mubr.bf16.gmra.mxu0 %v807
        %v843 = vpop.f32.mrf.mxu0
        %v844 = vadd.f32 0.0, %v843
        %v845 = vpop.f32.mrf.mxu0
        %v846 = vpop.f32.mrf.mxu0
        %v847 = vpop.f32.mrf.mxu0
        %848 = vdwg.mxu0
        %v853 = vunpack.c.l.b16 %v774
        %v854 = vunpack.c.l.b16 %v775
        %v855 = vunpack.c.l.b16 %v776
        %v856 = vunpack.c.l.b16 %v777
        %v857 = vpack.c.b16 %v854, %v853
        %v858 = vpack.c.b16 %v856, %v855
        %861 = vmatprep.subr.bf16.mxu0 0
        %862 = vmatpush1.bf16.msra.mxu0 0
        %863 = vmatprep.subr.bf16.mxu0 0
        %864 = vmatpush1.bf16.msra.mxu0 0
        %865 = vmatprep.subr.bf16.mxu0 0
        %866 = vmatpush1.bf16.msra.mxu0 0
        %867 = vmatprep.subr.bf16.mxu0 0
        %868 = vmatpush1.bf16.msra.mxu0 0
        %869 = vmatprep.subr.bf16.mxu0 0
        %870 = vmatpush1.bf16.msra.mxu0 0
        %871 = vmatprep.subr.bf16.mxu0 0
        %872 = vmatpush1.bf16.msra.mxu0 0
        %873 = vmatprep.subr.bf16.mxu0 0
        %874 = vmatpush1.bf16.msra.mxu0 %v858
        %875 = vmatprep.subr.bf16.mxu0 0
        %876 = vmatpush1.bf16.msra.mxu0 %v857
        %877 = vmatprep.subr.bf16.mxu0 0
        %878 = vmatpush2.bf16.msra.mxu0 0
        %879 = vmatprep.subr.bf16.mxu0 0
        %880 = vmatpush2.bf16.msra.mxu0 0
        %881 = vmatprep.subr.bf16.mxu0 0
        %882 = vmatpush2.bf16.msra.mxu0 0
        %883 = vmatprep.subr.bf16.mxu0 0
        %884 = vmatpush2.bf16.msra.mxu0 0
        %885 = vmatprep.subr.bf16.mxu0 0
        %886 = vmatpush2.bf16.msra.mxu0 0
        %887 = vmatprep.subr.bf16.mxu0 0
        %888 = vmatpush2.bf16.msra.mxu0 0
        %889 = vmatprep.subr.bf16.mxu0 0
        %890 = vmatpush2.bf16.msra.mxu0 0
        %891 = vmatprep.subr.bf16.mxu0 0
        %892 = vmatpush2.bf16.msra.mxu0 0
        %893 = vmatprep.mubr.bf16.mxu0 0
        %894 = vmatmul.mubr.bf16.gmra.mxu0 %v807
        %v895 = vpop.f32.mrf.mxu0
        %v896 = vadd.f32 0.0, %v895
        %v897 = vpop.f32.mrf.mxu0
        %v898 = vpop.f32.mrf.mxu0
        %v899 = vpop.f32.mrf.mxu0
        %900 = vdwg.mxu0
        %v905 = vunpack.c.l.b16 %v778
        %v906 = vunpack.c.l.b16 %v779
        %v907 = vunpack.c.l.b16 %v780
        %v908 = vunpack.c.l.b16 %v781
        %v909 = vpack.c.b16 %v906, %v905
        %v910 = vpack.c.b16 %v908, %v907
        %913 = vmatprep.subr.bf16.mxu0 0
        %914 = vmatpush1.bf16.msra.mxu0 0
        %915 = vmatprep.subr.bf16.mxu0 0
        %916 = vmatpush1.bf16.msra.mxu0 0
        %917 = vmatprep.subr.bf16.mxu0 0
        %918 = vmatpush1.bf16.msra.mxu0 0
        %919 = vmatprep.subr.bf16.mxu0 0
        %920 = vmatpush1.bf16.msra.mxu0 0
        %921 = vmatprep.subr.bf16.mxu0 0
        %922 = vmatpush1.bf16.msra.mxu0 0
        %923 = vmatprep.subr.bf16.mxu0 0
        %924 = vmatpush1.bf16.msra.mxu0 0
        %925 = vmatprep.subr.bf16.mxu0 0
        %926 = vmatpush1.bf16.msra.mxu0 %v910
        %927 = vmatprep.subr.bf16.mxu0 0
        %928 = vmatpush1.bf16.msra.mxu0 %v909
        %929 = vmatprep.subr.bf16.mxu0 0
        %930 = vmatpush2.bf16.msra.mxu0 0
        %931 = vmatprep.subr.bf16.mxu0 0
        %932 = vmatpush2.bf16.msra.mxu0 0
        %933 = vmatprep.subr.bf16.mxu0 0
        %934 = vmatpush2.bf16.msra.mxu0 0
        %935 = vmatprep.subr.bf16.mxu0 0
        %936 = vmatpush2.bf16.msra.mxu0 0
        %937 = vmatprep.subr.bf16.mxu0 0
        %938 = vmatpush2.bf16.msra.mxu0 0
        %939 = vmatprep.subr.bf16.mxu0 0
        %940 = vmatpush2.bf16.msra.mxu0 0
        %941 = vmatprep.subr.bf16.mxu0 0
        %942 = vmatpush2.bf16.msra.mxu0 0
        %943 = vmatprep.subr.bf16.mxu0 0
        %944 = vmatpush2.bf16.msra.mxu0 0
        %945 = vmatprep.mubr.bf16.mxu0 0
        %946 = vmatmul.mubr.bf16.gmra.mxu0 %v807
        %v947 = vpop.f32.mrf.mxu0
        %v948 = vadd.f32 0.0, %v947
        %v949 = vpop.f32.mrf.mxu0
        %v950 = vpop.f32.mrf.mxu0
        %v951 = vpop.f32.mrf.mxu0
        %952 = vdwg.mxu0
        %v957 = vunpack.c.l.b16 %v782
        %v958 = vunpack.c.l.b16 %v783
        %v959 = vunpack.c.l.b16 %v784
        %v960 = vunpack.c.l.b16 %v785
        %v961 = vpack.c.b16 %v958, %v957
        %v962 = vpack.c.b16 %v960, %v959
        %965 = vmatprep.subr.bf16.mxu0 0
        %966 = vmatpush1.bf16.msra.mxu0 0
        %967 = vmatprep.subr.bf16.mxu0 0
        %968 = vmatpush1.bf16.msra.mxu0 0
        %969 = vmatprep.subr.bf16.mxu0 0
        %970 = vmatpush1.bf16.msra.mxu0 0
        %971 = vmatprep.subr.bf16.mxu0 0
        %972 = vmatpush1.bf16.msra.mxu0 0
        %973 = vmatprep.subr.bf16.mxu0 0
        %974 = vmatpush1.bf16.msra.mxu0 0
        %975 = vmatprep.subr.bf16.mxu0 0
        %976 = vmatpush1.bf16.msra.mxu0 0
        %977 = vmatprep.subr.bf16.mxu0 0
        %978 = vmatpush1.bf16.msra.mxu0 %v962
        %979 = vmatprep.subr.bf16.mxu0 0
        %980 = vmatpush1.bf16.msra.mxu0 %v961
        %981 = vmatprep.subr.bf16.mxu0 0
        %982 = vmatpush2.bf16.msra.mxu0 0
        %983 = vmatprep.subr.bf16.mxu0 0
        %984 = vmatpush2.bf16.msra.mxu0 0
        %985 = vmatprep.subr.bf16.mxu0 0
        %986 = vmatpush2.bf16.msra.mxu0 0
        %987 = vmatprep.subr.bf16.mxu0 0
        %988 = vmatpush2.bf16.msra.mxu0 0
        %989 = vmatprep.subr.bf16.mxu0 0
        %990 = vmatpush2.bf16.msra.mxu0 0
        %991 = vmatprep.subr.bf16.mxu0 0
        %992 = vmatpush2.bf16.msra.mxu0 0
        %993 = vmatprep.subr.bf16.mxu0 0
        %994 = vmatpush2.bf16.msra.mxu0 0
        %995 = vmatprep.subr.bf16.mxu0 0
        %996 = vmatpush2.bf16.msra.mxu0 0
        %997 = vmatprep.mubr.bf16.mxu0 0
        %998 = vmatmul.mubr.bf16.gmra.mxu0 %v807
        %v999 = vpop.f32.mrf.mxu0
        %v1000 = vadd.f32 0.0, %v999
        %v1001 = vpop.f32.mrf.mxu0
        %v1002 = vpop.f32.mrf.mxu0
        %v1003 = vpop.f32.mrf.mxu0
        %1004 = vdwg.mxu0
        %v1009 = vunpack.c.l.b16 %v786
        %v1010 = vunpack.c.l.b16 %v787
        %v1011 = vunpack.c.l.b16 %v788
        %v1012 = vunpack.c.l.b16 %v789
        %v1013 = vpack.c.b16 %v1010, %v1009
        %v1014 = vpack.c.b16 %v1012, %v1011
        %1017 = vmatprep.subr.bf16.mxu0 0
        %1018 = vmatpush1.bf16.msra.mxu0 0
        %1019 = vmatprep.subr.bf16.mxu0 0
        %1020 = vmatpush1.bf16.msra.mxu0 0
        %1021 = vmatprep.subr.bf16.mxu0 0
        %1022 = vmatpush1.bf16.msra.mxu0 0
        %1023 = vmatprep.subr.bf16.mxu0 0
        %1024 = vmatpush1.bf16.msra.mxu0 0
        %1025 = vmatprep.subr.bf16.mxu0 0
        %1026 = vmatpush1.bf16.msra.mxu0 0
        %1027 = vmatprep.subr.bf16.mxu0 0
        %1028 = vmatpush1.bf16.msra.mxu0 0
        %1029 = vmatprep.subr.bf16.mxu0 0
        %1030 = vmatpush1.bf16.msra.mxu0 %v1014
        %1031 = vmatprep.subr.bf16.mxu0 0
        %1032 = vmatpush1.bf16.msra.mxu0 %v1013
        %1033 = vmatprep.subr.bf16.mxu0 0
        %1034 = vmatpush2.bf16.msra.mxu0 0
        %1035 = vmatprep.subr.bf16.mxu0 0
        %1036 = vmatpush2.bf16.msra.mxu0 0
        %1037 = vmatprep.subr.bf16.mxu0 0
        %1038 = vmatpush2.bf16.msra.mxu0 0
        %1039 = vmatprep.subr.bf16.mxu0 0
        %1040 = vmatpush2.bf16.msra.mxu0 0
        %1041 = vmatprep.subr.bf16.mxu0 0
        %1042 = vmatpush2.bf16.msra.mxu0 0
        %1043 = vmatprep.subr.bf16.mxu0 0
        %1044 = vmatpush2.bf16.msra.mxu0 0
        %1045 = vmatprep.subr.bf16.mxu0 0
        %1046 = vmatpush2.bf16.msra.mxu0 0
        %1047 = vmatprep.subr.bf16.mxu0 0
        %1048 = vmatpush2.bf16.msra.mxu0 0
        %1049 = vmatprep.mubr.bf16.mxu0 0
        %1050 = vmatmul.mubr.bf16.gmra.mxu0 %v807
        %v1051 = vpop.f32.mrf.mxu0
        %v1052 = vadd.f32 0.0, %v1051
        %v1053 = vpop.f32.mrf.mxu0
        %v1054 = vpop.f32.mrf.mxu0
        %v1055 = vpop.f32.mrf.mxu0
        %1056 = vdwg.mxu0
        %v1061 = vunpack.c.l.b16 %v790
        %v1062 = vunpack.c.l.b16 %v791
        %v1063 = vunpack.c.l.b16 %v792
        %v1064 = vunpack.c.l.b16 %v793
        %v1065 = vpack.c.b16 %v1062, %v1061
        %v1066 = vpack.c.b16 %v1064, %v1063
        %1069 = vmatprep.subr.bf16.mxu0 0
        %1070 = vmatpush1.bf16.msra.mxu0 0
        %1071 = vmatprep.subr.bf16.mxu0 0
        %1072 = vmatpush1.bf16.msra.mxu0 0
        %1073 = vmatprep.subr.bf16.mxu0 0
        %1074 = vmatpush1.bf16.msra.mxu0 0
        %1075 = vmatprep.subr.bf16.mxu0 0
        %1076 = vmatpush1.bf16.msra.mxu0 0
        %1077 = vmatprep.subr.bf16.mxu0 0
        %1078 = vmatpush1.bf16.msra.mxu0 0
        %1079 = vmatprep.subr.bf16.mxu0 0
        %1080 = vmatpush1.bf16.msra.mxu0 0
        %1081 = vmatprep.subr.bf16.mxu0 0
        %1082 = vmatpush1.bf16.msra.mxu0 %v1066
        %1083 = vmatprep.subr.bf16.mxu0 0
        %1084 = vmatpush1.bf16.msra.mxu0 %v1065
        %1085 = vmatprep.subr.bf16.mxu0 0
        %1086 = vmatpush2.bf16.msra.mxu0 0
        %1087 = vmatprep.subr.bf16.mxu0 0
        %1088 = vmatpush2.bf16.msra.mxu0 0
        %1089 = vmatprep.subr.bf16.mxu0 0
        %1090 = vmatpush2.bf16.msra.mxu0 0
        %1091 = vmatprep.subr.bf16.mxu0 0
        %1092 = vmatpush2.bf16.msra.mxu0 0
        %1093 = vmatprep.subr.bf16.mxu0 0
        %1094 = vmatpush2.bf16.msra.mxu0 0
        %1095 = vmatprep.subr.bf16.mxu0 0
        %1096 = vmatpush2.bf16.msra.mxu0 0
        %1097 = vmatprep.subr.bf16.mxu0 0
        %1098 = vmatpush2.bf16.msra.mxu0 0
        %1099 = vmatprep.subr.bf16.mxu0 0
        %1100 = vmatpush2.bf16.msra.mxu0 0
        %1101 = vmatprep.mubr.bf16.mxu0 0
        %1102 = vmatmul.mubr.bf16.gmra.mxu0 %v807
        %v1103 = vpop.f32.mrf.mxu0
        %v1104 = vadd.f32 0.0, %v1103
        %v1105 = vpop.f32.mrf.mxu0
        %v1106 = vpop.f32.mrf.mxu0
        %v1107 = vpop.f32.mrf.mxu0
        %1108 = vdwg.mxu0
        %v1109 = vpack.c.bf16 %v896, %v844
        %v1110 = vpack.c.bf16 %v1000, %v948
        %v1111 = vld [vmem:[%s3] sm:$0xf]
        %v1112 = vld [vmem:[%s3 + $0x4] sm:$0xf]
        %v1113 = vld [vmem:[%s3 + $0x8] sm:$0xf]
        %v1114 = vld [vmem:[%s3 + $0xc] sm:$0xf]
        %v1115 = vld [vmem:[%s3 + $0x10] sm:$0xf]
        %v1116 = vld [vmem:[%s3 + $0x14] sm:$0xf]
        %v1117 = vld [vmem:[%s3 + $0x18] sm:$0xf]
        %v1118 = vld [vmem:[%s3 + $0x1c] sm:$0xf]
        %v1127 = vunpack.c.l.b16 %v1111
        %v1128 = vunpack.c.l.b16 %v1112
        %v1129 = vunpack.c.l.b16 %v1113
        %v1130 = vunpack.c.l.b16 %v1114
        %v1131 = vunpack.c.l.b16 %v1115
        %v1132 = vunpack.c.l.b16 %v1116
        %v1133 = vunpack.c.l.b16 %v1117
        %v1134 = vunpack.c.l.b16 %v1118
        %v1135 = vpack.c.b16 %v1128, %v1127
        %v1136 = vpack.c.b16 %v1130, %v1129
        %v1137 = vpack.c.b16 %v1132, %v1131
        %v1138 = vpack.c.b16 %v1134, %v1133
        %vm1143 = vcmask 523264
        %v1145 = vsel %vm1143, %v1109, 0
        %v1148 = vsel %vm1143, %v1110, 0
        %1150 = vmatprep.subr.bf16.mxu0 0
        %1151 = vmatpush1.bf16.msra.mxu0 0
        %1152 = vmatprep.subr.bf16.mxu0 0
        %1153 = vmatpush1.bf16.msra.mxu0 0
        %1154 = vmatprep.subr.bf16.mxu0 0
        %1155 = vmatpush1.bf16.msra.mxu0 0
        %1156 = vmatprep.subr.bf16.mxu0 0
        %1157 = vmatpush1.bf16.msra.mxu0 0
        %1158 = vmatprep.subr.bf16.mxu0 0
        %1159 = vmatpush1.bf16.msra.mxu0 %v1138
        %1160 = vmatprep.subr.bf16.mxu0 0
        %1161 = vmatpush1.bf16.msra.mxu0 %v1137
        %1162 = vmatprep.subr.bf16.mxu0 0
        %1163 = vmatpush1.bf16.msra.mxu0 %v1136
        %1164 = vmatprep.subr.bf16.mxu0 0
        %1165 = vmatpush1.bf16.msra.mxu0 %v1135
        %1166 = vmatprep.subr.bf16.mxu0 0
        %1167 = vmatpush2.bf16.msra.mxu0 0
        %1168 = vmatprep.subr.bf16.mxu0 0
        %1169 = vmatpush2.bf16.msra.mxu0 0
        %1170 = vmatprep.subr.bf16.mxu0 0
        %1171 = vmatpush2.bf16.msra.mxu0 0
        %1172 = vmatprep.subr.bf16.mxu0 0
        %1173 = vmatpush2.bf16.msra.mxu0 0
        %1174 = vmatprep.subr.bf16.mxu0 0
        %1175 = vmatpush2.bf16.msra.mxu0 0
        %1176 = vmatprep.subr.bf16.mxu0 0
        %1177 = vmatpush2.bf16.msra.mxu0 0
        %1178 = vmatprep.subr.bf16.mxu0 0
        %1179 = vmatpush2.bf16.msra.mxu0 0
        %1180 = vmatprep.subr.bf16.mxu0 0
        %1181 = vmatpush2.bf16.msra.mxu0 0
        %1182 = vmatprep.mubr.bf16.mxu0 0
        %1183 = vmatmul.mubr.bf16.gmra.mxu0 %v1145
        %v1184 = vpop.f32.mrf.mxu0
        %v1185 = vadd.f32 0.0, %v1184
        %v1186 = vpop.f32.mrf.mxu0
        %v1187 = vpop.f32.mrf.mxu0
        %v1188 = vadd.f32 0.0, %v1187
        %v1189 = vpop.f32.mrf.mxu0
        %1190 = vmatprep.mubr.bf16.mxu0 0
        %1191 = vmatmul.mubr.bf16.gmra.mxu0 %v1148
        %v1192 = vpop.f32.mrf.mxu0
        %v1193 = vadd.f32 0.0, %v1192
        %v1194 = vpop.f32.mrf.mxu0
        %v1195 = vpop.f32.mrf.mxu0
        %v1196 = vadd.f32 0.0, %v1195
        %v1197 = vpop.f32.mrf.mxu0
        %1198 = vdwg.mxu0
        %v1199 = vld [vmem:[%s1] sm:$0xff]
        %v1200 = vmul.f32 %v844, %v1199
        %v1201 = vmul.f32 %v896, %v1199
        %v1202 = vmul.f32 %v948, %v1199
        %v1203 = vmul.f32 %v1000, %v1199
        %v1204 = vld [vmem:[%s2] sm:$0xff]
        %v1205 = vmul.f32 %v1185, %v1204
        %v1206 = vmul.f32 %v1188, %v1204
        %v1207 = vmul.f32 %v1193, %v1204
        %v1208 = vmul.f32 %v1196, %v1204
        %v1209 = vadd.f32 %v1200, %v1205
        %v1210 = vadd.f32 %v1201, %v1206
        %v1211 = vadd.f32 %v1202, %v1207
        %v1212 = vadd.f32 %v1203, %v1208
        %v1213 = vpack.c.bf16 %v1209, %v1209
        %v1214 = vpack.c.bf16 %v1210, %v1210
        %v1215 = vpack.c.bf16 %v1211, %v1211
        %v1216 = vpack.c.bf16 %v1212, %v1212
        %v1217 = vld [vmem:[%s4] sm:$0xff]
        %v1219 = vsel %vm1143, %v1213, 0
        %v1222 = vsel %vm1143, %v1215, 0
        %1224 = vmatprep.subr.bf16.mxu0 0
        %1225 = vmatpush1.bf16.xpose.msra.mxu0 0
        %1226 = vmatprep.subr.bf16.mxu0 0
        %1227 = vmatpush1.bf16.xpose.msra.mxu0 0
        %1228 = vmatprep.subr.bf16.mxu0 0
        %1229 = vmatpush1.bf16.xpose.msra.mxu0 0
        %1230 = vmatprep.subr.bf16.mxu0 0
        %1231 = vmatpush1.bf16.xpose.msra.mxu0 0
        %1232 = vmatprep.subr.bf16.mxu0 0
        %1233 = vmatpush1.bf16.xpose.msra.mxu0 0
        %1234 = vmatprep.subr.bf16.mxu0 0
        %1235 = vmatpush1.bf16.xpose.msra.mxu0 0
        %1236 = vmatprep.subr.bf16.mxu0 0
        %1237 = vmatpush1.bf16.xpose.msra.mxu0 0
        %1238 = vmatprep.subr.bf16.mxu0 0
        %1239 = vmatpush1.bf16.xpose.msra.mxu0 %v1222
        %1240 = vmatprep.subr.bf16.mxu0 0
        %1241 = vmatpush2.bf16.xpose.msra.mxu0 0
        %1242 = vmatprep.subr.bf16.mxu0 0
        %1243 = vmatpush2.bf16.xpose.msra.mxu0 0
        %1244 = vmatprep.subr.bf16.mxu0 0
        %1245 = vmatpush2.bf16.xpose.msra.mxu0 0
        %1246 = vmatprep.subr.bf16.mxu0 0
        %1247 = vmatpush2.bf16.xpose.msra.mxu0 0
        %1248 = vmatprep.subr.bf16.mxu0 0
        %1249 = vmatpush2.bf16.xpose.msra.mxu0 0
        %1250 = vmatprep.subr.bf16.mxu0 0
        %1251 = vmatpush2.bf16.xpose.msra.mxu0 0
        %1252 = vmatprep.subr.bf16.mxu0 0
        %1253 = vmatpush2.bf16.xpose.msra.mxu0 0
        %1254 = vmatprep.subr.bf16.mxu0 0
        %1255 = vmatpush2.bf16.xpose.msra.mxu0 0
        %1256 = vmatprep.mubr.bf16.mxu0 0
        %1257 = vmatmul.mubr.bf16.gmra.mxu0 %v1219
        %v1258 = vpop.f32.mrf.mxu0
        %v1259 = vadd.f32 %v1217, %v1258
        %v1260 = vpop.f32.mrf.mxu0
        %v1261 = vpop.f32.mrf.mxu0
        %v1262 = vpop.f32.mrf.mxu0
        %1263 = vdwg.mxu0
        %v1265 = vsel %vm1143, %v1214, 0
        %v1268 = vsel %vm1143, %v1216, 0
        %1270 = vmatprep.subr.bf16.mxu0 0
        %1271 = vmatpush1.bf16.xpose.msra.mxu0 0
        %1272 = vmatprep.subr.bf16.mxu0 0
        %1273 = vmatpush1.bf16.xpose.msra.mxu0 0
        %1274 = vmatprep.subr.bf16.mxu0 0
        %1275 = vmatpush1.bf16.xpose.msra.mxu0 0
        %1276 = vmatprep.subr.bf16.mxu0 0
        %1277 = vmatpush1.bf16.xpose.msra.mxu0 0
        %1278 = vmatprep.subr.bf16.mxu0 0
        %1279 = vmatpush1.bf16.xpose.msra.mxu0 0
        %1280 = vmatprep.subr.bf16.mxu0 0
        %1281 = vmatpush1.bf16.xpose.msra.mxu0 0
        %1282 = vmatprep.subr.bf16.mxu0 0
        %1283 = vmatpush1.bf16.xpose.msra.mxu0 0
        %1284 = vmatprep.subr.bf16.mxu0 0
        %1285 = vmatpush1.bf16.xpose.msra.mxu0 %v1268
        %1286 = vmatprep.subr.bf16.mxu0 0
        %1287 = vmatpush2.bf16.xpose.msra.mxu0 0
        %1288 = vmatprep.subr.bf16.mxu0 0
        %1289 = vmatpush2.bf16.xpose.msra.mxu0 0
        %1290 = vmatprep.subr.bf16.mxu0 0
        %1291 = vmatpush2.bf16.xpose.msra.mxu0 0
        %1292 = vmatprep.subr.bf16.mxu0 0
        %1293 = vmatpush2.bf16.xpose.msra.mxu0 0
        %1294 = vmatprep.subr.bf16.mxu0 0
        %1295 = vmatpush2.bf16.xpose.msra.mxu0 0
        %1296 = vmatprep.subr.bf16.mxu0 0
        %1297 = vmatpush2.bf16.xpose.msra.mxu0 0
        %1298 = vmatprep.subr.bf16.mxu0 0
        %1299 = vmatpush2.bf16.xpose.msra.mxu0 0
        %1300 = vmatprep.subr.bf16.mxu0 0
        %1301 = vmatpush2.bf16.xpose.msra.mxu0 0
        %1302 = vmatprep.mubr.bf16.mxu0 0
        %1303 = vmatmul.mubr.bf16.gmra.mxu0 %v1265
        %v1304 = vpop.f32.mrf.mxu0
        %v1305 = vadd.f32 %v1217, %v1304
        %v1306 = vpop.f32.mrf.mxu0
        %v1307 = vpop.f32.mrf.mxu0
        %v1308 = vpop.f32.mrf.mxu0
        %1309 = vdwg.mxu0
        %vm1310 = vcmask 64512
        %v1311 = vsel %vm1310, %v1259, -inf
        %1312 = vmax.xlane.f32.xlu0 %v1311
        %v1313 = vpop.xlane.xlu0 %1312
        %v1314 = vsel %vm1310, %v1305, -inf
        %1315 = vmax.xlane.f32.xlu0 %v1314
        %v1316 = vpop.xlane.xlu0 %1315
        %v1317 = vsub.f32 %v1259, %v1313
        %v1318 = vsub.f32 %v1305, %v1316
        %v1319 = vmul.f32 %v1317, 1.442695
        %v1320 = vpow.pop %v1319
        %v1321 = vmul.f32 %v1318, 1.442695
        %v1322 = vpow.pop %v1321
        %v1323 = vsel %vm1310, %v1320, 0.0
        %1324 = vadd.xlane.f32.xlu0 %v1323
        %v1325 = vpop.xlane.xlu0 %1324
        %v1326 = vsel %vm1310, %v1322, 0.0
        %1327 = vadd.xlane.f32.xlu0 %v1326
        %v1328 = vpop.xlane.xlu0 %1327
        %v1329 = vrcp.pop %v1325
        %v1330 = vrcp.pop %v1328
        %v1331 = vmul.f32 %v1320, %v1329
        %v1332 = vmul.f32 %v1322, %v1330
        %v1333 = vpack.c.bf16 %v1331, %v1331
        %v1334 = vpack.c.bf16 %v1332, %v1332
        %v1335 = vpack.c.bf16 %v1052, %v1052
        %v1336 = vpack.c.bf16 %v1104, %v1104
        %v1338 = vsel %vm1310, %v1333, 0
        %vm1340 = vcmask 1043456
        %v1342 = vsel %vm1340, %v1335, 0
        %1344 = vmatprep.subr.bf16.mxu0 0
        %1345 = vmatpush1.bf16.msra.mxu0 0
        %1346 = vmatprep.subr.bf16.mxu0 0
        %1347 = vmatpush1.bf16.msra.mxu0 0
        %1348 = vmatprep.subr.bf16.mxu0 0
        %1349 = vmatpush1.bf16.msra.mxu0 0
        %1350 = vmatprep.subr.bf16.mxu0 0
        %1351 = vmatpush1.bf16.msra.mxu0 0
        %1352 = vmatprep.subr.bf16.mxu0 0
        %1353 = vmatpush1.bf16.msra.mxu0 0
        %1354 = vmatprep.subr.bf16.mxu0 0
        %1355 = vmatpush1.bf16.msra.mxu0 0
        %1356 = vmatprep.subr.bf16.mxu0 0
        %1357 = vmatpush1.bf16.msra.mxu0 0
        %1358 = vmatprep.subr.bf16.mxu0 0
        %1359 = vmatpush1.bf16.msra.mxu0 %v1342
        %1360 = vmatprep.subr.bf16.mxu0 0
        %1361 = vmatpush2.bf16.msra.mxu0 0
        %1362 = vmatprep.subr.bf16.mxu0 0
        %1363 = vmatpush2.bf16.msra.mxu0 0
        %1364 = vmatprep.subr.bf16.mxu0 0
        %1365 = vmatpush2.bf16.msra.mxu0 0
        %1366 = vmatprep.subr.bf16.mxu0 0
        %1367 = vmatpush2.bf16.msra.mxu0 0
        %1368 = vmatprep.subr.bf16.mxu0 0
        %1369 = vmatpush2.bf16.msra.mxu0 0
        %1370 = vmatprep.subr.bf16.mxu0 0
        %1371 = vmatpush2.bf16.msra.mxu0 0
        %1372 = vmatprep.subr.bf16.mxu0 0
        %1373 = vmatpush2.bf16.msra.mxu0 0
        %1374 = vmatprep.subr.bf16.mxu0 0
        %1375 = vmatpush2.bf16.msra.mxu0 0
        %1376 = vmatprep.mubr.bf16.mxu0 0
        %1377 = vmatmul.mubr.bf16.gmra.mxu0 %v1338
        %v1378 = vpop.f32.mrf.mxu0
        %v1379 = vadd.f32 0.0, %v1378
        %v1380 = vpop.f32.mrf.mxu0
        %v1381 = vpop.f32.mrf.mxu0
        %v1382 = vpop.f32.mrf.mxu0
        %1383 = vdwg.mxu0
        %v1385 = vsel %vm1310, %v1334, 0
        %v1388 = vsel %vm1340, %v1336, 0
        %1390 = vmatprep.subr.bf16.mxu0 0
        %1391 = vmatpush1.bf16.msra.mxu0 0
        %1392 = vmatprep.subr.bf16.mxu0 0
        %1393 = vmatpush1.bf16.msra.mxu0 0
        %1394 = vmatprep.subr.bf16.mxu0 0
        %1395 = vmatpush1.bf16.msra.mxu0 0
        %1396 = vmatprep.subr.bf16.mxu0 0
        %1397 = vmatpush1.bf16.msra.mxu0 0
        %1398 = vmatprep.subr.bf16.mxu0 0
        %1399 = vmatpush1.bf16.msra.mxu0 0
        %1400 = vmatprep.subr.bf16.mxu0 0
        %1401 = vmatpush1.bf16.msra.mxu0 0
        %1402 = vmatprep.subr.bf16.mxu0 0
        %1403 = vmatpush1.bf16.msra.mxu0 0
        %1404 = vmatprep.subr.bf16.mxu0 0
        %1405 = vmatpush1.bf16.msra.mxu0 %v1388
        %1406 = vmatprep.subr.bf16.mxu0 0
        %1407 = vmatpush2.bf16.msra.mxu0 0
        %1408 = vmatprep.subr.bf16.mxu0 0
        %1409 = vmatpush2.bf16.msra.mxu0 0
        %1410 = vmatprep.subr.bf16.mxu0 0
        %1411 = vmatpush2.bf16.msra.mxu0 0
        %1412 = vmatprep.subr.bf16.mxu0 0
        %1413 = vmatpush2.bf16.msra.mxu0 0
        %1414 = vmatprep.subr.bf16.mxu0 0
        %1415 = vmatpush2.bf16.msra.mxu0 0
        %1416 = vmatprep.subr.bf16.mxu0 0
        %1417 = vmatpush2.bf16.msra.mxu0 0
        %1418 = vmatprep.subr.bf16.mxu0 0
        %1419 = vmatpush2.bf16.msra.mxu0 0
        %1420 = vmatprep.subr.bf16.mxu0 0
        %1421 = vmatpush2.bf16.msra.mxu0 0
        %1422 = vmatprep.mubr.bf16.mxu0 0
        %1423 = vmatmul.mubr.bf16.gmra.mxu0 %v1385
        %v1424 = vpop.f32.mrf.mxu0
        %v1425 = vadd.f32 0.0, %v1424
        %v1426 = vpop.f32.mrf.mxu0
        %v1427 = vpop.f32.mrf.mxu0
        %v1428 = vpop.f32.mrf.mxu0
        %1429 = vdwg.mxu0
        %v1430 = vpack.c.bf16 %v1379, %v1379
        %v1431 = vpack.c.bf16 %v1425, %v1425
        %v1432 = vld [vmem:[%s656] sm:$0xf]
        %v1433 = vld [vmem:[%s656 + $0x4] sm:$0xf]
        %v1434 = vld [vmem:[%s656 + $0x8] sm:$0xf]
        %v1435 = vld [vmem:[%s656 + $0xc] sm:$0xf]
        %v1436 = vld [vmem:[%s656 + $0x10] sm:$0xf]
        %v1437 = vld [vmem:[%s656 + $0x14] sm:$0xf]
        %v1438 = vld [vmem:[%s656 + $0x18] sm:$0xf]
        %v1439 = vld [vmem:[%s656 + $0x1c] sm:$0xf]
        %v1440 = vld [vmem:[%s656 + $0x20] sm:$0xf]
        %v1441 = vld [vmem:[%s656 + $0x24] sm:$0xf]
        %v1442 = vld [vmem:[%s656 + $0x28] sm:$0xf]
        %v1443 = vld [vmem:[%s656 + $0x2c] sm:$0xf]
        %v1444 = vld [vmem:[%s656 + $0x30] sm:$0xf]
        %v1445 = vld [vmem:[%s656 + $0x34] sm:$0xf]
        %v1446 = vld [vmem:[%s656 + $0x38] sm:$0xf]
        %v1447 = vld [vmem:[%s656 + $0x3c] sm:$0xf]
        %v1456 = vunpack.c.l.b16 %v1432
        %v1457 = vunpack.c.l.b16 %v1433
        %v1458 = vunpack.c.l.b16 %v1434
        %v1459 = vunpack.c.l.b16 %v1435
        %v1460 = vunpack.c.l.b16 %v1436
        %v1461 = vunpack.c.l.b16 %v1437
        %v1462 = vunpack.c.l.b16 %v1438
        %v1463 = vunpack.c.l.b16 %v1439
        %v1464 = vpack.c.b16 %v1457, %v1456
        %v1465 = vpack.c.b16 %v1459, %v1458
        %v1466 = vpack.c.b16 %v1461, %v1460
        %v1467 = vpack.c.b16 %v1463, %v1462
        %v1473 = vsel %vm1143, %v1430, 0
        %1475 = vmatprep.subr.bf16.mxu0 0
        %1476 = vmatpush1.bf16.msra.mxu0 0
        %1477 = vmatprep.subr.bf16.mxu0 0
        %1478 = vmatpush1.bf16.msra.mxu0 0
        %1479 = vmatprep.subr.bf16.mxu0 0
        %1480 = vmatpush1.bf16.msra.mxu0 0
        %1481 = vmatprep.subr.bf16.mxu0 0
        %1482 = vmatpush1.bf16.msra.mxu0 0
        %1483 = vmatprep.subr.bf16.mxu0 0
        %1484 = vmatpush1.bf16.msra.mxu0 %v1467
        %1485 = vmatprep.subr.bf16.mxu0 0
        %1486 = vmatpush1.bf16.msra.mxu0 %v1466
        %1487 = vmatprep.subr.bf16.mxu0 0
        %1488 = vmatpush1.bf16.msra.mxu0 %v1465
        %1489 = vmatprep.subr.bf16.mxu0 0
        %1490 = vmatpush1.bf16.msra.mxu0 %v1464
        %1491 = vmatprep.subr.bf16.mxu0 0
        %1492 = vmatpush2.bf16.msra.mxu0 0
        %1493 = vmatprep.subr.bf16.mxu0 0
        %1494 = vmatpush2.bf16.msra.mxu0 0
        %1495 = vmatprep.subr.bf16.mxu0 0
        %1496 = vmatpush2.bf16.msra.mxu0 0
        %1497 = vmatprep.subr.bf16.mxu0 0
        %1498 = vmatpush2.bf16.msra.mxu0 0
        %1499 = vmatprep.subr.bf16.mxu0 0
        %1500 = vmatpush2.bf16.msra.mxu0 0
        %1501 = vmatprep.subr.bf16.mxu0 0
        %1502 = vmatpush2.bf16.msra.mxu0 0
        %1503 = vmatprep.subr.bf16.mxu0 0
        %1504 = vmatpush2.bf16.msra.mxu0 0
        %1505 = vmatprep.subr.bf16.mxu0 0
        %1506 = vmatpush2.bf16.msra.mxu0 0
        %1507 = vmatprep.mubr.bf16.mxu0 0
        %1508 = vmatmul.mubr.bf16.gmra.mxu0 %v1473
        %v1509 = vpop.f32.mrf.mxu0
        %v1510 = vadd.f32 0.0, %v1509
        %v1511 = vpop.f32.mrf.mxu0
        %v1512 = vpop.f32.mrf.mxu0
        %v1513 = vpop.f32.mrf.mxu0
        %1514 = vdwg.mxu0
        %v1523 = vunpack.c.l.b16 %v1440
        %v1524 = vunpack.c.l.b16 %v1441
        %v1525 = vunpack.c.l.b16 %v1442
        %v1526 = vunpack.c.l.b16 %v1443
        %v1527 = vunpack.c.l.b16 %v1444
        %v1528 = vunpack.c.l.b16 %v1445
        %v1529 = vunpack.c.l.b16 %v1446
        %v1530 = vunpack.c.l.b16 %v1447
        %v1531 = vpack.c.b16 %v1524, %v1523
        %v1532 = vpack.c.b16 %v1526, %v1525
        %v1533 = vpack.c.b16 %v1528, %v1527
        %v1534 = vpack.c.b16 %v1530, %v1529
        %v1540 = vsel %vm1143, %v1431, 0
        %1542 = vmatprep.subr.bf16.mxu0 0
        %1543 = vmatpush1.bf16.msra.mxu0 0
        %1544 = vmatprep.subr.bf16.mxu0 0
        %1545 = vmatpush1.bf16.msra.mxu0 0
        %1546 = vmatprep.subr.bf16.mxu0 0
        %1547 = vmatpush1.bf16.msra.mxu0 0
        %1548 = vmatprep.subr.bf16.mxu0 0
        %1549 = vmatpush1.bf16.msra.mxu0 0
        %1550 = vmatprep.subr.bf16.mxu0 0
        %1551 = vmatpush1.bf16.msra.mxu0 %v1534
        %1552 = vmatprep.subr.bf16.mxu0 0
        %1553 = vmatpush1.bf16.msra.mxu0 %v1533
        %1554 = vmatprep.subr.bf16.mxu0 0
        %1555 = vmatpush1.bf16.msra.mxu0 %v1532
        %1556 = vmatprep.subr.bf16.mxu0 0
        %1557 = vmatpush1.bf16.msra.mxu0 %v1531
        %1558 = vmatprep.subr.bf16.mxu0 0
        %1559 = vmatpush2.bf16.msra.mxu0 0
        %1560 = vmatprep.subr.bf16.mxu0 0
        %1561 = vmatpush2.bf16.msra.mxu0 0
        %1562 = vmatprep.subr.bf16.mxu0 0
        %1563 = vmatpush2.bf16.msra.mxu0 0
        %1564 = vmatprep.subr.bf16.mxu0 0
        %1565 = vmatpush2.bf16.msra.mxu0 0
        %1566 = vmatprep.subr.bf16.mxu0 0
        %1567 = vmatpush2.bf16.msra.mxu0 0
        %1568 = vmatprep.subr.bf16.mxu0 0
        %1569 = vmatpush2.bf16.msra.mxu0 0
        %1570 = vmatprep.subr.bf16.mxu0 0
        %1571 = vmatpush2.bf16.msra.mxu0 0
        %1572 = vmatprep.subr.bf16.mxu0 0
        %1573 = vmatpush2.bf16.msra.mxu0 0
        %1574 = vmatprep.mubr.bf16.mxu0 0
        %1575 = vmatmul.mubr.bf16.gmra.mxu0 %v1540
        %v1576 = vpop.f32.mrf.mxu0
        %v1577 = vadd.f32 0.0, %v1576
        %v1578 = vpop.f32.mrf.mxu0
        %v1579 = vpop.f32.mrf.mxu0
        %v1580 = vpop.f32.mrf.mxu0
        %1581 = vdwg.mxu0
        %v1582 = vsel %vm744, %v1510, 0.0
        %v1583 = vsel %vm744, %v1577, 0.0
        %v1584 = vadd.f32 %v1582, %v1583
        %v1585 = vadd.f32 %v742, %v1584
        %v1586 = vlaneseq
        %v1587 = vshrl.u32 %v1586, 7
        %v1588 = vsub.s32 2, %v1587
        %v1589 = vrot.slane %v743, %v1588
        %v1590 = vadd.f32 %v1585, %v1589
        %v1591 = vsel %vm744, %v1590, 0.0
        %1592 = vadd.xlane.f32.xlu0 %v1591
        %v1593 = vpop.xlane.xlu0 %1592
        %v1594 = vmul.f32 %v1593, %v748
        %v1595 = vsub.f32 %v1590, %v1594
        %v1596 = vmul.f32 %v1595, %v1595
        %v1597 = vsel %vm744, %v1596, 0.0
        %1598 = vadd.xlane.f32.xlu0 %v1597
        %v1599 = vpop.xlane.xlu0 %1598
        %v1600 = vmul.f32 %v1599, %v748
        %v1601 = vadd.f32 %v1600, 1e-05
        %v1602 = vrsqrt.pop %v1601
        %v1603 = vmul.f32 %v1595, %v1602
        %v1604 = vlaneseq
        %v1605 = vshrl.u32 %v1604, 7
        %v1606 = vsub.s32 3, %v1605
        %v1607 = vrot.slane %v743, %v1606
        %v1608 = vmul.f32 %v1603, %v1607
        %v1609 = vlaneseq
        %v1610 = vshrl.u32 %v1609, 7
        %v1611 = vsub.s32 4, %v1610
        %v1612 = vrot.slane %v743, %v1611
        %v1613 = vadd.f32 %v1608, %v1612
        %v1614 = vpack.c.bf16 %v1613, %v1613
        %v1615 = vld [vmem:[%s661] sm:$0xf]
        %v1616 = vld [vmem:[%s661 + $0x4] sm:$0xf]
        %v1617 = vld [vmem:[%s661 + $0x8] sm:$0xf]
        %v1618 = vld [vmem:[%s661 + $0xc] sm:$0xf]
        %v1619 = vld [vmem:[%s646] sm:$0x1]
        %v1621 = vlaneseq
        %v1622 = vshrl.u32 %v1621, 7
        %v1623 = vsub.s32 0, %v1622
        %v1624 = vrot.slane %v1619, %v1623
        %v1630 = vunpack.c.l.b16 %v1615
        %v1631 = vunpack.c.l.b16 %v1616
        %v1632 = vunpack.c.l.b16 %v1617
        %v1633 = vunpack.c.l.b16 %v1618
        %v1634 = vpack.c.b16 %v1631, %v1630
        %v1635 = vpack.c.b16 %v1633, %v1632
        %v1639 = vsel %vm744, %v1614, 0
        %1641 = vmatprep.subr.bf16.mxu0 0
        %1642 = vmatpush1.bf16.msra.mxu0 0
        %1643 = vmatprep.subr.bf16.mxu0 0
        %1644 = vmatpush1.bf16.msra.mxu0 0
        %1645 = vmatprep.subr.bf16.mxu0 0
        %1646 = vmatpush1.bf16.msra.mxu0 0
        %1647 = vmatprep.subr.bf16.mxu0 0
        %1648 = vmatpush1.bf16.msra.mxu0 0
        %1649 = vmatprep.subr.bf16.mxu0 0
        %1650 = vmatpush1.bf16.msra.mxu0 0
        %1651 = vmatprep.subr.bf16.mxu0 0
        %1652 = vmatpush1.bf16.msra.mxu0 0
        %1653 = vmatprep.subr.bf16.mxu0 0
        %1654 = vmatpush1.bf16.msra.mxu0 %v1635
        %1655 = vmatprep.subr.bf16.mxu0 0
        %1656 = vmatpush1.bf16.msra.mxu0 %v1634
        %1657 = vmatprep.subr.bf16.mxu0 0
        %1658 = vmatpush2.bf16.msra.mxu0 0
        %1659 = vmatprep.subr.bf16.mxu0 0
        %1660 = vmatpush2.bf16.msra.mxu0 0
        %1661 = vmatprep.subr.bf16.mxu0 0
        %1662 = vmatpush2.bf16.msra.mxu0 0
        %1663 = vmatprep.subr.bf16.mxu0 0
        %1664 = vmatpush2.bf16.msra.mxu0 0
        %1665 = vmatprep.subr.bf16.mxu0 0
        %1666 = vmatpush2.bf16.msra.mxu0 0
        %1667 = vmatprep.subr.bf16.mxu0 0
        %1668 = vmatpush2.bf16.msra.mxu0 0
        %1669 = vmatprep.subr.bf16.mxu0 0
        %1670 = vmatpush2.bf16.msra.mxu0 0
        %1671 = vmatprep.subr.bf16.mxu0 0
        %1672 = vmatpush2.bf16.msra.mxu0 0
        %1673 = vmatprep.mubr.bf16.mxu0 0
        %1674 = vmatmul.mubr.bf16.gmra.mxu0 %v1639
        %v1675 = vpop.f32.mrf.mxu0
        %v1676 = vadd.f32 %v1624, %v1675
        %v1677 = vpop.f32.mrf.mxu0
        %v1678 = vpop.f32.mrf.mxu0
        %v1679 = vpop.f32.mrf.mxu0
        %1680 = vdwg.mxu0
        %v1681 = vmul.f32 %v1676, %v1676
        %v1682 = vmul.f32 %v1676, %v1681
        %v1683 = vmul.f32 %v1682, 0.044715
        %v1684 = vadd.f32 %v1676, %v1683
        %v1685 = vmul.f32 %v1684, 0.7978846
        %v1686 = vtanh.pop %v1685
        %v1687 = vadd.f32 %v1686, 1.0
        %v1688 = vmul.f32 %v1687, 0.5
        %v1689 = vmul.f32 %v1676, %v1688
        %v1690 = vpack.c.bf16 %v1689, %v1689
        %v1691 = vld [vmem:[%s666] sm:$0xf]
        %v1692 = vld [vmem:[%s666 + $0x4] sm:$0xf]
        %v1693 = vld [vmem:[%s666 + $0x8] sm:$0xf]
        %v1694 = vld [vmem:[%s666 + $0xc] sm:$0xf]
        %v1695 = vld [vmem:[%s666 + $0x10] sm:$0xf]
        %v1696 = vld [vmem:[%s666 + $0x14] sm:$0xf]
        %v1697 = vld [vmem:[%s666 + $0x18] sm:$0xf]
        %v1698 = vld [vmem:[%s666 + $0x1c] sm:$0xf]
        %v1699 = vld [vmem:[%s666 + $0x20] sm:$0xf]
        %v1700 = vld [vmem:[%s666 + $0x24] sm:$0xf]
        %v1701 = vld [vmem:[%s666 + $0x28] sm:$0xf]
        %v1702 = vld [vmem:[%s666 + $0x2c] sm:$0xf]
        %v1703 = vld [vmem:[%s666 + $0x30] sm:$0xf]
        %v1704 = vld [vmem:[%s666 + $0x34] sm:$0xf]
        %v1705 = vld [vmem:[%s666 + $0x38] sm:$0xf]
        %v1706 = vld [vmem:[%s666 + $0x3c] sm:$0xf]
        %v1707 = vlaneseq
        %v1708 = vshrl.u32 %v1707, 7
        %v1709 = vsub.s32 5, %v1708
        %v1710 = vrot.slane %v743, %v1709
        %v1727 = vunpack.c.l.b16 %v1691
        %v1728 = vunpack.c.l.b16 %v1692
        %v1729 = vunpack.c.l.b16 %v1693
        %v1730 = vunpack.c.l.b16 %v1694
        %v1731 = vunpack.c.l.b16 %v1695
        %v1732 = vunpack.c.l.b16 %v1696
        %v1733 = vunpack.c.l.b16 %v1697
        %v1734 = vunpack.c.l.b16 %v1698
        %v1735 = vunpack.c.l.b16 %v1699
        %v1736 = vunpack.c.l.b16 %v1700
        %v1737 = vunpack.c.l.b16 %v1701
        %v1738 = vunpack.c.l.b16 %v1702
        %v1739 = vunpack.c.l.b16 %v1703
        %v1740 = vunpack.c.l.b16 %v1704
        %v1741 = vunpack.c.l.b16 %v1705
        %v1742 = vunpack.c.l.b16 %v1706
        %v1743 = vpack.c.b16 %v1728, %v1727
        %v1744 = vpack.c.b16 %v1730, %v1729
        %v1745 = vpack.c.b16 %v1732, %v1731
        %v1746 = vpack.c.b16 %v1734, %v1733
        %v1747 = vpack.c.b16 %v1736, %v1735
        %v1748 = vpack.c.b16 %v1738, %v1737
        %v1749 = vpack.c.b16 %v1740, %v1739
        %v1750 = vpack.c.b16 %v1742, %v1741
        %1759 = vmatprep.subr.bf16.mxu0 0
        %1760 = vmatpush1.bf16.msra.mxu0 %v1750
        %1761 = vmatprep.subr.bf16.mxu0 0
        %1762 = vmatpush1.bf16.msra.mxu0 %v1749
        %1763 = vmatprep.subr.bf16.mxu0 0
        %1764 = vmatpush1.bf16.msra.mxu0 %v1748
        %1765 = vmatprep.subr.bf16.mxu0 0
        %1766 = vmatpush1.bf16.msra.mxu0 %v1747
        %1767 = vmatprep.subr.bf16.mxu0 0
        %1768 = vmatpush1.bf16.msra.mxu0 %v1746
        %1769 = vmatprep.subr.bf16.mxu0 0
        %1770 = vmatpush1.bf16.msra.mxu0 %v1745
        %1771 = vmatprep.subr.bf16.mxu0 0
        %1772 = vmatpush1.bf16.msra.mxu0 %v1744
        %1773 = vmatprep.subr.bf16.mxu0 0
        %1774 = vmatpush1.bf16.msra.mxu0 %v1743
        %1775 = vmatprep.subr.bf16.mxu0 0
        %1776 = vmatpush2.bf16.msra.mxu0 0
        %1777 = vmatprep.subr.bf16.mxu0 0
        %1778 = vmatpush2.bf16.msra.mxu0 0
        %1779 = vmatprep.subr.bf16.mxu0 0
        %1780 = vmatpush2.bf16.msra.mxu0 0
        %1781 = vmatprep.subr.bf16.mxu0 0
        %1782 = vmatpush2.bf16.msra.mxu0 0
        %1783 = vmatprep.subr.bf16.mxu0 0
        %1784 = vmatpush2.bf16.msra.mxu0 0
        %1785 = vmatprep.subr.bf16.mxu0 0
        %1786 = vmatpush2.bf16.msra.mxu0 0
        %1787 = vmatprep.subr.bf16.mxu0 0
        %1788 = vmatpush2.bf16.msra.mxu0 0
        %1789 = vmatprep.subr.bf16.mxu0 0
        %1790 = vmatpush2.bf16.msra.mxu0 0
        %1791 = vmatprep.mubr.bf16.mxu0 0
        %1792 = vmatmul.mubr.bf16.gmra.mxu0 %v1690
        %v1793 = vpop.f32.mrf.mxu0
        %v1794 = vadd.f32 %v1710, %v1793
        %v1795 = vpop.f32.mrf.mxu0
        %v1796 = vpop.f32.mrf.mxu0
        %v1797 = vpop.f32.mrf.mxu0
        %1798 = vdwg.mxu0
        %v1799 = vadd.f32 %v1590, %v1794
        %1800 = vst.msk [vmem:[#allocation2] sm:$0xff] %vm744, %v1799
        %p1801 = scmp.eq.s32.totalorder %s36, 1
        // Predicated region
        $region93: #{transformer_encoder_layer.1} parent=87 // pred_check
          %p1802 = pneg %p1801
        $region94: #{transformer_encoder_layer.1} parent=87 // pred_check_branch
          %1804 = sbr.rel (%p1802) target = $region96
        $region95: #{transformer_encoder_layer.1} parent=87 // pred_region
          %v1805 = vld [vmem:[%s7] sm:$0x1]
          %v1806 = vld [vmem:[%s8] sm:$0x1]
          %v1807 = vsel %vm744, %v1799, 0.0
          %1808 = vadd.xlane.f32.xlu0 %v1807
          %v1809 = vpop.xlane.xlu0 %1808
          %v1810 = vmul.f32 %v1809, %v748
          %v1811 = vsub.f32 %v1799, %v1810
          %v1812 = vmul.f32 %v1811, %v1811
          %v1813 = vsel %vm744, %v1812, 0.0
          %1814 = vadd.xlane.f32.xlu0 %v1813
          %v1815 = vpop.xlane.xlu0 %1814
          %v1816 = vmul.f32 %v1815, %v748
          %v1817 = vadd.f32 %v1816, 1e-05
          %v1818 = vrsqrt.pop %v1817
          %v1819 = vmul.f32 %v1811, %v1818
          %v1821 = vlaneseq
          %v1822 = vshrl.u32 %v1821, 7
          %v1823 = vsub.s32 0, %v1822
          %v1824 = vrot.slane %v1805, %v1823
          %v1826 = vmul.f32 %v1819, %v1824
          %v1828 = vlaneseq
          %v1829 = vshrl.u32 %v1828, 7
          %v1830 = vsub.s32 0, %v1829
          %v1831 = vrot.slane %v1806, %v1830
          %v1833 = vadd.f32 %v1826, %v1831
          %v1834 = vpack.c.bf16 %v1833, %v1833
          %v1835 = vld [vmem:[%s9] sm:$0xf]
          %v1836 = vld [vmem:[%s9 + $0x4] sm:$0xf]
          %v1837 = vld [vmem:[%s9 + $0x8] sm:$0xf]
          %v1838 = vld [vmem:[%s9 + $0xc] sm:$0xf]
          %v1839 = vld [vmem:[%s10] sm:$0x1]
          %v1841 = vlaneseq
          %v1842 = vshrl.u32 %v1841, 7
          %v1843 = vsub.s32 0, %v1842
          %v1844 = vrot.slane %v1839, %v1843
          %v1850 = vunpack.c.l.b16 %v1835
          %v1851 = vunpack.c.l.b16 %v1836
          %v1852 = vunpack.c.l.b16 %v1837
          %v1853 = vunpack.c.l.b16 %v1838
          %v1854 = vpack.c.b16 %v1851, %v1850
          %v1855 = vpack.c.b16 %v1853, %v1852
          %v1859 = vsel %vm744, %v1834, 0
          %1861 = vmatprep.subr.bf16.mxu0 0
          %1862 = vmatpush1.bf16.msra.mxu0 0
          %1863 = vmatprep.subr.bf16.mxu0 0
          %1864 = vmatpush1.bf16.msra.mxu0 0
          %1865 = vmatprep.subr.bf16.mxu0 0
          %1866 = vmatpush1.bf16.msra.mxu0 0
          %1867 = vmatprep.subr.bf16.mxu0 0
          %1868 = vmatpush1.bf16.msra.mxu0 0
          %1869 = vmatprep.subr.bf16.mxu0 0
          %1870 = vmatpush1.bf16.msra.mxu0 0
          %1871 = vmatprep.subr.bf16.mxu0 0
          %1872 = vmatpush1.bf16.msra.mxu0 0
          %1873 = vmatprep.subr.bf16.mxu0 0
          %1874 = vmatpush1.bf16.msra.mxu0 %v1855
          %1875 = vmatprep.subr.bf16.mxu0 0
          %1876 = vmatpush1.bf16.msra.mxu0 %v1854
          %1877 = vmatprep.subr.bf16.mxu0 0
          %1878 = vmatpush2.bf16.msra.mxu0 0
          %1879 = vmatprep.subr.bf16.mxu0 0
          %1880 = vmatpush2.bf16.msra.mxu0 0
          %1881 = vmatprep.subr.bf16.mxu0 0
          %1882 = vmatpush2.bf16.msra.mxu0 0
          %1883 = vmatprep.subr.bf16.mxu0 0
          %1884 = vmatpush2.bf16.msra.mxu0 0
          %1885 = vmatprep.subr.bf16.mxu0 0
          %1886 = vmatpush2.bf16.msra.mxu0 0
          %1887 = vmatprep.subr.bf16.mxu0 0
          %1888 = vmatpush2.bf16.msra.mxu0 0
          %1889 = vmatprep.subr.bf16.mxu0 0
          %1890 = vmatpush2.bf16.msra.mxu0 0
          %1891 = vmatprep.subr.bf16.mxu0 0
          %1892 = vmatpush2.bf16.msra.mxu0 0
          %1893 = vmatprep.mubr.bf16.mxu0 0
          %1894 = vmatmul.mubr.bf16.gmra.mxu0 %v1859
          %v1895 = vpop.f32.mrf.mxu0
          %v1896 = vadd.f32 %v1844, %v1895
          %v1897 = vpop.f32.mrf.mxu0
          %v1898 = vpop.f32.mrf.mxu0
          %v1899 = vpop.f32.mrf.mxu0
          %1900 = vdwg.mxu0
          %1901 = vst [vmem:[%s635] sm:$0xff] %v1896
        $region96: #{transformer_encoder_layer.1} parent=87 // pred_fallthru
          _
        %s1902 = sand.u32 %s443, 1
        %s1903 = scalar_lea.sflag [#allocation4], %s1902
        %s1904 = sand.u32 %s443, 1
        %s1905 = smul.addr %s1904, 8
        %s1906 = scalar_lea.vmem [#allocation3], %s1905
        // Predicated region
        $region97: #{transformer_encoder_layer.1} parent=87 // pred_check
          %p1907 = pneg %p453
        $region98: #{transformer_encoder_layer.1} parent=87 // pred_check_branch
          %1909 = sbr.rel (%p1907) target = $region100
        $region99: #{transformer_encoder_layer.1} parent=87 // pred_region
          %s1911 = ssub.s32 128, 128
          %1912 = vsyncadd %s1903, %s1911
          %s1913 = smul.addr %s35, 128
          %s1914 = scalar_lea.hbm %s17, %s1913
          %s1916 = sshll.u32 %s1906, 4
          %s1917 = int_to_ptr.vmem [resolvable:$true] %s1916
          %1919 = dma.vmem_to_hbm [thread:$0]  %s1917, 128, %s1914, %s1903
        $region100: #{transformer_encoder_layer.1} parent=87 // pred_fallthru
          _
      $region88: #{transformer_encoder_layer.1} parent=5 // pred_fallthru
        _
      %p1920 = scmp.le.s32.totalorder 2, %s26
      // Predicated region
      $region101: #{transformer_encoder_layer.1} parent=5 // pred_check
        %p1921 = pneg %p1920
      $region102: #{transformer_encoder_layer.1} parent=5 // pred_check_branch
        %1923 = sbr.rel (%p1921) target = $region104
      $region103: #{transformer_encoder_layer.1} parent=5 // pred_region
        %s1924 = ssub.s32 %s26, 2
        // Predicated region
        $region105: #{transformer_encoder_layer.1} parent=103 // pred_check
          %p1925 = pneg %p459
        $region106: #{transformer_encoder_layer.1} parent=103 // pred_check_branch
          %1927 = sbr.rel (%p1925) target = $region108
        $region107: #{transformer_encoder_layer.1} parent=103 // pred_region
          %s1928 = sand.u32 %s444, 1
          %s1929 = scalar_lea.sflag [#allocation4], %s1928
          %s1930 = sand.u32 %s444, 1
          %s1931 = smul.addr %s1930, 8
          %s1932 = scalar_lea.vmem [#allocation3], %s1931
          %1933 = dma.done %s1929, 128
        $region108: #{transformer_encoder_layer.1} parent=103 // pred_fallthru
          _
      $region104: #{transformer_encoder_layer.1} parent=5 // pred_fallthru
        _
    $region6: #{transformer_encoder_layer.1} parent=1 // loop_footer
      %s30 = sadd.s32 1, %s26
    $region7: #{transformer_encoder_layer.1} parent=1 // loop_footer_branch
      %25 = sbr.rel target = $region3
    $region8: #{transformer_encoder_layer.1} parent=1 // loop_exit
      _
    %1934 = vsyncpa [#allocation4], 1
    %s1935 = scalar_lea.sflag [#allocation4], 1
    %1936 = vsyncpa %s1935, 1

</llo_original>
